<compile_context>
chip_gen: v7x
topology: tpu7x:2x2x1
jax: 0.10.0
libtpu: 0.0.40
codegen_flags: <defaults>
</compile_context>

<pallas_src>
import functools
import math

import jax
import jax.numpy as jnp
import numpy as np
from jax import lax
from jax.experimental import pallas as pl
from jax.experimental.pallas import tpu as pltpu

_LANE = 128
_BYTES_PER_ROW_ELEM = 32   # ~ f32 in/out double-buffered + bf16/f32 kernel temps


def _round_up(x, m):
    return (x + m - 1) // m * m


def _vmem_budget_and_limit():
    """Generation-aware (activation-block budget, compiler vmem limit) in bytes."""
    try:
        cap = pltpu.get_tpu_info().vmem_capacity_bytes
    except Exception:               # non-TPU host / interpret-only environment
        cap = 64 * 1024 * 1024      # assume the smallest physical VMEM (v7x)
    if cap >= 96 * 1024 * 1024:     # v5e / v6e: 128 MiB physical, HBM-bound regime
        return 56 * 1024 * 1024, 100 * 1024 * 1024
    return 24 * 1024 * 1024, 40 * 1024 * 1024       # v7x: 64 MiB physical


def _choose_block_rows(m_pad, row_unit, cpad, act_budget_bytes, max_block_rows=None):
    """Largest multiple of row_unit dividing m_pad that fits the activation budget,
    preferring >=4 grid steps (DMA/compute overlap) and >=2 (megacore sharding)."""
    n_units = m_pad // row_unit
    budget_rows = max(row_unit, act_budget_bytes // (_BYTES_PER_ROW_ELEM * cpad))
    if max_block_rows is not None:
        budget_rows = min(budget_rows, max(row_unit, max_block_rows))
    divisors = [d for d in range(1, n_units + 1) if n_units % d == 0]

    def pick(min_steps):
        ok = [d for d in divisors
              if d * row_unit <= budget_rows and n_units // d >= min_steps]
        return max(ok) * row_unit if ok else None

    return pick(4) or pick(2) or pick(1)


def _roll_rows(y, delta):
    # pltpu.roll requires a non-negative static shift; delta in {-1, +1}.
    return pltpu.roll(y, shift=delta % y.shape[0], axis=0)


def _conv_residual_kernel(x_ref, w1_ref, b1_ref, w2_ref, b2_ref, o_ref, *, width):
    # x_ref/o_ref: (BM, Cpad), rows ordered with the conv (W) axis fastest; BM % W == 0.
    # w*_ref: (3, Cpad, Cpad) bf16, tap k multiplies x[w + k - 1].  b*_ref: (1, Cpad) f32.
    x = x_ref[...].astype(jnp.float32)
    bm = x.shape[0]

    # Blocks are W-aligned, so the w-position of a row is just row % W.
    w_pos = lax.broadcasted_iota(jnp.int32, (bm, 1), 0) % width
    has_left = w_pos != 0
    has_right = w_pos != (width - 1)

    def conv1x3(t, w_ref, b_ref):
        # Three K=Cpad matmuls accumulated in f32 (no (BM, 3*Cpad) concat copy).
        # roll(t) @ W == roll(t @ W): shift the f32 matmul outputs along the sublane
        # axis and zero the rows whose neighbour lies in the conv's zero padding,
        # instead of materialising shifted input copies.
        tb = t.astype(jnp.bfloat16)                 # single bf16 cast feeds all taps
        y_c = jnp.dot(tb, w_ref[1], preferred_element_type=jnp.float32)
        y_l = jnp.dot(tb, w_ref[0], preferred_element_type=jnp.float32)
        y_r = jnp.dot(tb, w_ref[2], preferred_element_type=jnp.float32)
        acc = y_c + jnp.where(has_left, _roll_rows(y_l, 1), 0.0)
        acc = acc + jnp.where(has_right, _roll_rows(y_r, -1), 0.0)
        return acc + b_ref[...]

    t = jnp.maximum(x, 0.0)                 # activation (f32)
    t = conv1x3(t, w1_ref, b1_ref)          # conv_layers[0]
    t = jnp.maximum(t, 0.0)                 # activation; dropout(p=0.0) is identity
    t = conv1x3(t, w2_ref, b2_ref)          # conv_layers[1] (zero-initialized)
    o_ref[...] = (x + t).astype(o_ref.dtype)        # residual add in f32


def _pack_weight(w, c, cpad):
    # torch (Cout, Cin, 1, 3) -> (3, Cin, Cout), zero-pad channels, bf16.
    wt = jnp.transpose(w[:, :, 0, :], (2, 1, 0))
    wt = jnp.pad(wt, ((0, 0), (0, cpad - c), (0, cpad - c)))
    return wt.astype(jnp.bfloat16)


def _pack_bias(b, c, cpad):
    return jnp.pad(b, (0, cpad - c)).reshape(1, cpad).astype(jnp.float32)


def conv_residual_block_nhwc(x_nhwc, w1, b1, w2, b2, *, max_block_rows=None):
    """Channels-last fast path: x (N, H, W, C); w* torch-layout (C, C, 1, 3); b* (C,)."""
    N, H, W, C = x_nhwc.shape
    cpad = _round_up(C, _LANE)
    M = N * H * W
    row_unit = (W * 8) // math.gcd(W, 8)     # lcm(W, 8): W-aligned, 8-row-tiled blocks
    m_pad = _round_up(M, row_unit)

    x2 = x_nhwc.reshape(M, C)
    if m_pad != M or cpad != C:              # skip the pad pass when already aligned
        x2 = jnp.pad(x2, ((0, m_pad - M), (0, cpad - C)))

    w1p = _pack_weight(w1, C, cpad)
    w2p = _pack_weight(w2, C, cpad)
    b1p = _pack_bias(b1, C, cpad)
    b2p = _pack_bias(b2, C, cpad)

    budget, vmem_limit = _vmem_budget_and_limit()
    # Resident weight/bias footprint (double-buffered by the pipeline) comes off the budget.
    weight_bytes = 2 * 2 * (3 * cpad * cpad * 2 + cpad * 4)
    bm = _choose_block_rows(m_pad, row_unit, cpad, budget - weight_bytes, max_block_rows)
    grid = (m_pad // bm,)

    out2 = pl.pallas_call(
        functools.partial(_conv_residual_kernel, width=W),
        out_shape=jax.ShapeDtypeStruct((m_pad, cpad), x_nhwc.dtype),
        grid_spec=pltpu.PrefetchScalarGridSpec(
            num_scalar_prefetch=0,
            grid=grid,
            in_specs=[
                pl.BlockSpec((bm, cpad), lambda i: (i, 0)),          # x rows (streamed)
                pl.BlockSpec((3, cpad, cpad), lambda i: (0, 0, 0)),  # conv1 weights (constant)
                pl.BlockSpec((1, cpad), lambda i: (0, 0)),           # conv1 bias
                pl.BlockSpec((3, cpad, cpad), lambda i: (0, 0, 0)),  # conv2 weights (constant)
                pl.BlockSpec((1, cpad), lambda i: (0, 0)),           # conv2 bias
            ],
            out_specs=pl.BlockSpec((bm, cpad), lambda i: (i, 0)),
        ),
        compiler_params=pltpu.CompilerParams(
            dimension_semantics=("parallel",),
            vmem_limit_bytes=vmem_limit,
        ),
    )(x2, w1p, b1p, w2p, b2p)

    if m_pad != M or cpad != C:
        out2 = out2[:M, :C]
    return out2.reshape(N, H, W, C)


def conv_residual_block(x_nchw, w1, b1, w2, b2, *, max_block_rows=None):
    """PyTorch-layout adapter: x (N, C, H, W).  Prefer the NHWC entry point in a
    channels-last network to avoid the two relayout passes around the kernel."""
    x_nhwc = jnp.transpose(x_nchw, (0, 2, 3, 1))
    out = conv_residual_block_nhwc(x_nhwc, w1, b1, w2, b2, max_block_rows=max_block_rows)
    return jnp.transpose(out, (0, 3, 1, 2))


def reference(x, w1, b1, w2, b2):
    """Plain-JAX reference matching PyTorch semantics (NCHW, OIHW), all f32."""
    def conv(t, w, b):
        y = lax.conv_general_dilated(
            t, w, window_strides=(1, 1), padding=((0, 0), (1, 1)),
            dimension_numbers=("NCHW", "OIHW", "NCHW"))
        return y + b[None, :, None, None]

    t = jnp.maximum(x, 0.0)
    t = conv(t, w1, b1)
    t = jnp.maximum(t, 0.0)
    t = conv(t, w2, b2)
    return x + t


if __name__ == "__main__":
    key = jax.random.PRNGKey(0)

    def make_case(k, N, C, H, W):
        kx, kw1, kb1, kw2, kb2 = jax.random.split(k, 5)
        x = jax.random.normal(kx, (N, C, H, W), dtype=jnp.float32)
        bound = 1.0 / np.sqrt(C * 1 * 3)     # PyTorch default init, fan_in = C*1*3
        w1 = jax.random.uniform(kw1, (C, C, 1, 3), jnp.float32, -bound, bound)
        b1 = jax.random.uniform(kb1, (C,), jnp.float32, -bound, bound)
        # zero_initialization=True -> uniform(-0.001, 0.001)
        w2 = jax.random.uniform(kw2, (C, C, 1, 3), jnp.float32, -0.001, 0.001)
        b2 = jax.random.uniform(kb2, (C,), jnp.float32, -0.001, 0.001)
        return x, w1, b1, w2, b2

    k1, k2 = jax.random.split(key)

    # bf16 MXU operands (f32 accumulation) => compare with bf16-level tolerances.
    RTOL, ATOL = 1e-2, 2e-3

    # Case 1: even W (2, 4, 16, 16) — auto-sized multi-block grid.
    x, w1, b1, w2, b2 = make_case(k1, 2, 4, 16, 16)
    ref = jax.block_until_ready(reference(x, w1, b1, w2, b2))
    out = jax.block_until_ready(conv_residual_block(x, w1, b1, w2, b2))
    np.testing.assert_allclose(np.asarray(out), np.asarray(ref), rtol=RTOL, atol=ATOL)

    # Forced small blocks: exercises roll/mask correctness across many tile boundaries.
    out_tiled = jax.block_until_ready(
        conv_residual_block(x, w1, b1, w2, b2, max_block_rows=32))
    np.testing.assert_allclose(np.asarray(out_tiled), np.asarray(ref), rtol=RTOL, atol=ATOL)

    # Case 2: odd W (2, 4, 5, 7) — exercises the M % lcm(W, 8) != 0 row-padding path.
    xb, w1b, b1b, w2b, b2b = make_case(k2, 2, 4, 5, 7)
    ref_b = jax.block_until_ready(reference(xb, w1b, b1b, w2b, b2b))
    out_b = jax.block_until_ready(conv_residual_block(xb, w1b, b1b, w2b, b2b))
    np.testing.assert_allclose(np.asarray(out_b), np.asarray(ref_b), rtol=RTOL, atol=ATOL)

    print("KERNEL_OK")
</pallas_src>

<mosaic_0001>
module attributes {stable_mosaic.version = 11 : i64} {
  func.func @_conv_residual_kernel(%arg0: i32, %arg1: memref<128x128xf32, #tpu.memory_space<vmem>>, %arg2: memref<3x128x128xbf16, #tpu.memory_space<vmem>>, %arg3: memref<1x128xf32, #tpu.memory_space<vmem>>, %arg4: memref<3x128x128xbf16, #tpu.memory_space<vmem>>, %arg5: memref<1x128xf32, #tpu.memory_space<vmem>>, %arg6: memref<128x128xf32, #tpu.memory_space<vmem>>) attributes {dimension_semantics = [#tpu.dimension_semantics<parallel>], iteration_bounds = array<i64: 4>, scalar_prefetch = 0 : i64, scratch_operands = 0 : i64, tpu.core_type = #tpu.core_type<tc>, window_params = [{transform_indices = @transform_0, window_bounds = array<i64: 128, 128>}, {pipeline_mode = #tpu.pipeline_mode<synchronous>, transform_indices = @transform_1, window_bounds = array<i64: 3, 128, 128>}, {pipeline_mode = #tpu.pipeline_mode<synchronous>, transform_indices = @transform_2, window_bounds = array<i64: 1, 128>}, {pipeline_mode = #tpu.pipeline_mode<synchronous>, transform_indices = @transform_3, window_bounds = array<i64: 3, 128, 128>}, {pipeline_mode = #tpu.pipeline_mode<synchronous>, transform_indices = @transform_4, window_bounds = array<i64: 1, 128>}, {transform_indices = @transform_5, window_bounds = array<i64: 128, 128>}]} {
    %c0 = arith.constant 0 : index
    %c0_0 = arith.constant 0 : index
    %0 = vector.load %arg1[%c0, %c0_0] : memref<128x128xf32, #tpu.memory_space<vmem>>, vector<128x128xf32>
    %1 = tpu.iota {dimensions = array<i32: 0>} : vector<128x1xi32>
    %c16_i32 = arith.constant 16 : i32
    %c0_i32 = arith.constant 0 : i32
    %2 = arith.cmpi eq, %c16_i32, %c0_i32 : i32
    %c1_i32 = arith.constant 1 : i32
    %3 = arith.select %2, %c1_i32, %c16_i32 : i32
    %4 = vector.broadcast %3 : i32 to vector<128x1xi32>
    %5 = arith.remsi %1, %4 : vector<128x1xi32>
    %c0_i32_1 = arith.constant 0 : i32
    %6 = vector.broadcast %c0_i32_1 : i32 to vector<128x1xi32>
    %7 = arith.cmpi ne, %5, %6 : vector<128x1xi32>
    %c0_i32_2 = arith.constant 0 : i32
    %8 = vector.broadcast %c0_i32_2 : i32 to vector<128x1xi32>
    %9 = arith.cmpi slt, %5, %8 : vector<128x1xi32>
    %c0_i32_3 = arith.constant 0 : i32
    %10 = arith.cmpi slt, %3, %c0_i32_3 : i32
    %11 = vector.broadcast %10 : i1 to vector<128x1xi1>
    %12 = vector.broadcast %11 : vector<128x1xi1> to vector<128x1xi1>
    %13 = arith.xori %9, %12 : vector<128x1xi1>
    %14 = arith.andi %13, %7 : vector<128x1xi1>
    %15 = vector.broadcast %3 : i32 to vector<128x1xi32>
    %16 = arith.addi %5, %15 : vector<128x1xi32>
    %17 = arith.select %14, %16, %5 : vector<128x1xi1>, vector<128x1xi32>
    %c0_i32_4 = arith.constant 0 : i32
    %18 = vector.broadcast %c0_i32_4 : i32 to vector<128x1xi32>
    %19 = arith.cmpi ne, %17, %18 : vector<128x1xi32>
    %c15_i32 = arith.constant 15 : i32
    %20 = vector.broadcast %c15_i32 : i32 to vector<128x1xi32>
    %21 = arith.cmpi ne, %17, %20 : vector<128x1xi32>
    %cst = arith.constant 0.000000e+00 : f32
    %22 = vector.broadcast %cst : f32 to vector<128x128xf32>
    %23 = arith.maximumf %0, %22 : vector<128x128xf32>
    %24 = arith.truncf %23 : vector<128x128xf32> to vector<128x128xbf16>
    %c1 = arith.constant 1 : index
    %c0_5 = arith.constant 0 : index
    %c0_6 = arith.constant 0 : index
    %25 = vector.load %arg2[%c1, %c0_5, %c0_6] : memref<3x128x128xbf16, #tpu.memory_space<vmem>>, vector<1x128x128xbf16>
    %26 = vector.shape_cast %25 : vector<1x128x128xbf16> to vector<128x128xbf16>
    %cst_7 = arith.constant dense<0.000000e+00> : vector<128x128xf32>
    %27 = tpu.matmul %24, %26, %cst_7 {dimension_numbers = #tpu.dot_dimension_numbers<[1], [0], [0], [1], [0, 0, 1, 1], [], []>} : vector<128x128xbf16>, vector<128x128xbf16>, vector<128x128xf32> -> vector<128x128xf32>
    %c0_8 = arith.constant 0 : index
    %c0_9 = arith.constant 0 : index
    %c0_10 = arith.constant 0 : index
    %28 = vector.load %arg2[%c0_8, %c0_9, %c0_10] : memref<3x128x128xbf16, #tpu.memory_space<vmem>>, vector<1x128x128xbf16>
    %29 = vector.shape_cast %28 : vector<1x128x128xbf16> to vector<128x128xbf16>
    %cst_11 = arith.constant dense<0.000000e+00> : vector<128x128xf32>
    %30 = tpu.matmul %24, %29, %cst_11 {dimension_numbers = #tpu.dot_dimension_numbers<[1], [0], [0], [1], [0, 0, 1, 1], [], []>} : vector<128x128xbf16>, vector<128x128xbf16>, vector<128x128xf32> -> vector<128x128xf32>
    %c2 = arith.constant 2 : index
    %c0_12 = arith.constant 0 : index
    %c0_13 = arith.constant 0 : index
    %31 = vector.load %arg2[%c2, %c0_12, %c0_13] : memref<3x128x128xbf16, #tpu.memory_space<vmem>>, vector<1x128x128xbf16>
    %32 = vector.shape_cast %31 : vector<1x128x128xbf16> to vector<128x128xbf16>
    %cst_14 = arith.constant dense<0.000000e+00> : vector<128x128xf32>
    %33 = tpu.matmul %24, %32, %cst_14 {dimension_numbers = #tpu.dot_dimension_numbers<[1], [0], [0], [1], [0, 0, 1, 1], [], []>} : vector<128x128xbf16>, vector<128x128xbf16>, vector<128x128xf32> -> vector<128x128xf32>
    %c1_i32_15 = arith.constant 1 : i32
    %34 = tpu.dynamic_rotate %30 by %c1_i32_15 dim 0 : vector<128x128xf32>, i32 -> vector<128x128xf32>
    %cst_16 = arith.constant 0.000000e+00 : f32
    %35 = vector.shape_cast %19 : vector<128x1xi1> to vector<128x1xi1>
    %36 = vector.broadcast %35 : vector<128x1xi1> to vector<128x128xi1>
    %37 = vector.broadcast %cst_16 : f32 to vector<128x128xf32>
    %38 = arith.select %36, %34, %37 : vector<128x128xi1>, vector<128x128xf32>
    %39 = arith.addf %27, %38 : vector<128x128xf32>
    %c127_i32 = arith.constant 127 : i32
    %40 = tpu.dynamic_rotate %33 by %c127_i32 dim 0 : vector<128x128xf32>, i32 -> vector<128x128xf32>
    %cst_17 = arith.constant 0.000000e+00 : f32
    %41 = vector.shape_cast %21 : vector<128x1xi1> to vector<128x1xi1>
    %42 = vector.broadcast %41 : vector<128x1xi1> to vector<128x128xi1>
    %43 = vector.broadcast %cst_17 : f32 to vector<128x128xf32>
    %44 = arith.select %42, %40, %43 : vector<128x128xi1>, vector<128x128xf32>
    %45 = arith.addf %39, %44 : vector<128x128xf32>
    %c0_18 = arith.constant 0 : index
    %c0_19 = arith.constant 0 : index
    %46 = vector.load %arg3[%c0_18, %c0_19] : memref<1x128xf32, #tpu.memory_space<vmem>>, vector<1x128xf32>
    %47 = vector.broadcast %46 : vector<1x128xf32> to vector<128x128xf32>
    %48 = arith.addf %45, %47 : vector<128x128xf32>
    %cst_20 = arith.constant 0.000000e+00 : f32
    %49 = vector.broadcast %cst_20 : f32 to vector<128x128xf32>
    %50 = arith.maximumf %48, %49 : vector<128x128xf32>
    %51 = arith.truncf %50 : vector<128x128xf32> to vector<128x128xbf16>
    %c1_21 = arith.constant 1 : index
    %c0_22 = arith.constant 0 : index
    %c0_23 = arith.constant 0 : index
    %52 = vector.load %arg4[%c1_21, %c0_22, %c0_23] : memref<3x128x128xbf16, #tpu.memory_space<vmem>>, vector<1x128x128xbf16>
    %53 = vector.shape_cast %52 : vector<1x128x128xbf16> to vector<128x128xbf16>
    %cst_24 = arith.constant dense<0.000000e+00> : vector<128x128xf32>
    %54 = tpu.matmul %51, %53, %cst_24 {dimension_numbers = #tpu.dot_dimension_numbers<[1], [0], [0], [1], [0, 0, 1, 1], [], []>} : vector<128x128xbf16>, vector<128x128xbf16>, vector<128x128xf32> -> vector<128x128xf32>
    %c0_25 = arith.constant 0 : index
    %c0_26 = arith.constant 0 : index
    %c0_27 = arith.constant 0 : index
    %55 = vector.load %arg4[%c0_25, %c0_26, %c0_27] : memref<3x128x128xbf16, #tpu.memory_space<vmem>>, vector<1x128x128xbf16>
    %56 = vector.shape_cast %55 : vector<1x128x128xbf16> to vector<128x128xbf16>
    %cst_28 = arith.constant dense<0.000000e+00> : vector<128x128xf32>
    %57 = tpu.matmul %51, %56, %cst_28 {dimension_numbers = #tpu.dot_dimension_numbers<[1], [0], [0], [1], [0, 0, 1, 1], [], []>} : vector<128x128xbf16>, vector<128x128xbf16>, vector<128x128xf32> -> vector<128x128xf32>
    %c2_29 = arith.constant 2 : index
    %c0_30 = arith.constant 0 : index
    %c0_31 = arith.constant 0 : index
    %58 = vector.load %arg4[%c2_29, %c0_30, %c0_31] : memref<3x128x128xbf16, #tpu.memory_space<vmem>>, vector<1x128x128xbf16>
    %59 = vector.shape_cast %58 : vector<1x128x128xbf16> to vector<128x128xbf16>
    %cst_32 = arith.constant dense<0.000000e+00> : vector<128x128xf32>
    %60 = tpu.matmul %51, %59, %cst_32 {dimension_numbers = #tpu.dot_dimension_numbers<[1], [0], [0], [1], [0, 0, 1, 1], [], []>} : vector<128x128xbf16>, vector<128x128xbf16>, vector<128x128xf32> -> vector<128x128xf32>
    %c1_i32_33 = arith.constant 1 : i32
    %61 = tpu.dynamic_rotate %57 by %c1_i32_33 dim 0 : vector<128x128xf32>, i32 -> vector<128x128xf32>
    %cst_34 = arith.constant 0.000000e+00 : f32
    %62 = vector.shape_cast %19 : vector<128x1xi1> to vector<128x1xi1>
    %63 = vector.broadcast %62 : vector<128x1xi1> to vector<128x128xi1>
    %64 = vector.broadcast %cst_34 : f32 to vector<128x128xf32>
    %65 = arith.select %63, %61, %64 : vector<128x128xi1>, vector<128x128xf32>
    %66 = arith.addf %54, %65 : vector<128x128xf32>
    %c127_i32_35 = arith.constant 127 : i32
    %67 = tpu.dynamic_rotate %60 by %c127_i32_35 dim 0 : vector<128x128xf32>, i32 -> vector<128x128xf32>
    %cst_36 = arith.constant 0.000000e+00 : f32
    %68 = vector.shape_cast %21 : vector<128x1xi1> to vector<128x1xi1>
    %69 = vector.broadcast %68 : vector<128x1xi1> to vector<128x128xi1>
    %70 = vector.broadcast %cst_36 : f32 to vector<128x128xf32>
    %71 = arith.select %69, %67, %70 : vector<128x128xi1>, vector<128x128xf32>
    %72 = arith.addf %66, %71 : vector<128x128xf32>
    %c0_37 = arith.constant 0 : index
    %c0_38 = arith.constant 0 : index
    %73 = vector.load %arg5[%c0_37, %c0_38] : memref<1x128xf32, #tpu.memory_space<vmem>>, vector<1x128xf32>
    %74 = vector.broadcast %73 : vector<1x128xf32> to vector<128x128xf32>
    %75 = arith.addf %72, %74 : vector<128x128xf32>
    %76 = arith.addf %0, %75 : vector<128x128xf32>
    %c0_39 = arith.constant 0 : index
    %c0_40 = arith.constant 0 : index
    %77 = vector.load %arg6[%c0_39, %c0_40] : memref<128x128xf32, #tpu.memory_space<vmem>>, vector<128x128xf32>
    tpu.vector_store %arg6[%c0_39, %c0_40], %76 {strides = array<i32>} : memref<128x128xf32, #tpu.memory_space<vmem>>, vector<128x128xf32>,
    return
  }
  func.func @transform_0(%arg0: i32) -> (i32, i32) {
    %c0_i32 = arith.constant 0 : i32
    %c0_i32_0 = arith.constant 0 : i32
    return %arg0, %c0_i32 : i32, i32
  }
  func.func @transform_1(%arg0: i32) -> (i32, i32, i32) {
    %c0_i32 = arith.constant 0 : i32
    %c0_i32_0 = arith.constant 0 : i32
    %c0_i32_1 = arith.constant 0 : i32
    %c0_i32_2 = arith.constant 0 : i32
    return %c0_i32, %c0_i32_0, %c0_i32_1 : i32, i32, i32
  }
  func.func @transform_2(%arg0: i32) -> (i32, i32) {
    %c0_i32 = arith.constant 0 : i32
    %c0_i32_0 = arith.constant 0 : i32
    %c0_i32_1 = arith.constant 0 : i32
    return %c0_i32, %c0_i32_0 : i32, i32
  }
  func.func @transform_3(%arg0: i32) -> (i32, i32, i32) {
    %c0_i32 = arith.constant 0 : i32
    %c0_i32_0 = arith.constant 0 : i32
    %c0_i32_1 = arith.constant 0 : i32
    %c0_i32_2 = arith.constant 0 : i32
    return %c0_i32, %c0_i32_0, %c0_i32_1 : i32, i32, i32
  }
  func.func @transform_4(%arg0: i32) -> (i32, i32) {
    %c0_i32 = arith.constant 0 : i32
    %c0_i32_0 = arith.constant 0 : i32
    %c0_i32_1 = arith.constant 0 : i32
    return %c0_i32, %c0_i32_0 : i32, i32
  }
  func.func @transform_5(%arg0: i32) -> (i32, i32) {
    %c0_i32 = arith.constant 0 : i32
    %c0_i32_0 = arith.constant 0 : i32
    return %arg0, %c0_i32 : i32, i32
  }
}

</mosaic_0001>

<llo_original>
// kernel: tpu_custom_call.1
$region0: #{tpu_custom_call.1}
  #allocation0 [shape = 'u32[]', space=smem, size = 0x4, offset = 0x4, fixed_abs, tag = 'smem constant byte address 0x4 - core index']
  #allocation1 [shape = 'u32[144,128]{1,0:T(1,128)}', space=vmem, size = 0x12000, scoped, tag = 'internal scratch']
  %s0 = inlined_call_operand.hbm [shape: f32[512,128], index: 0, kind: input, shape index: {}]
  %s1 = inlined_call_operand.hbm [shape: bf16[3,128,128], index: 1, kind: input, shape index: {}]
  %s2 = inlined_call_operand.vmem [shape: f32[1,128], index: 2, kind: input, shape index: {}]
  %s3 = inlined_call_operand.hbm [shape: bf16[3,128,128], index: 3, kind: input, shape index: {}]
  %s4 = inlined_call_operand.vmem [shape: f32[1,128], index: 4, kind: input, shape index: {}]
  %s5 = inlined_call_operand.hbm [shape: f32[512,128], index: 5, kind: output, shape index: {}]
  %s6 = sld [smem:[#allocation0]]
  $region65: #{tpu_custom_call.1} parent=0
    _
  %s8 = ssub.s32 1, %s6
  %s9 = scalar_select 0, %s8, %s6
  $region1: #{tpu_custom_call.1} parent=0
    #allocation2 [shape = 'u8[131072]{0}', space=vmem, size = 0x20000, scoped, tag = 'input window, operand 0']
    #allocation3 [shape = 's32[2]{0}', space=sflag, size = 0x8, scoped, tag = 'scoped memory for tpu_custom_call.1']
    #allocation4 [shape = 's32[2]{0}', space=sflag, size = 0x8, scoped, tag = 'scoped memory for tpu_custom_call.1']
    #allocation5 [shape = 'u8[98304]{0}', space=vmem, size = 0x18000, scoped, tag = 'input window, operand 1, single buffered']
    #allocation6 [shape = 's32[1]{0}', space=sflag, size = 0x4, scoped, tag = 'scoped memory for tpu_custom_call.1']
    #allocation7 [shape = 'u8[98304]{0}', space=vmem, size = 0x18000, scoped, tag = 'input window, operand 3, single buffered']
    #allocation8 [shape = 'u8[131072]{0}', space=vmem, size = 0x20000, scoped, tag = 'output window, operand 0']
    %10 = vsyncpa [#allocation3], 0
    %s11 = scalar_lea.sflag [#allocation3], 1
    %12 = vsyncpa %s11, 0
    %13 = vsyncpa [#allocation6], 0
    %14 = vsyncpa [#allocation4], 0
    %s15 = scalar_lea.sflag [#allocation4], 1
    %16 = vsyncpa %s15, 0
    loop: start=0, step=1, limit=6
    $region2: #{tpu_custom_call.1} parent=1 // loop_pre_header
      _
    $region3: #{tpu_custom_call.1} parent=1 // loop_header
      %s18 = sphi 0, %s22
      %p19 = scmp.ge.s32.totalorder %s18, 6
      %s28 = sphi 0, %s30
      %s31 = sphi 0, %s28
      %s32 = sphi 0, %s31
      %s48 = sphi 0, %s32
      %s52 = sphi 0, %s52
      %s54 = sphi 0, %s52
      %s55 = sphi 0, %s54
      %s69 = sphi 0, %s55
      %s73 = sphi 0, %s73
      %s75 = sphi 0, %s73
      %s76 = sphi 0, %s75
      %s90 = sphi 0, %s76
      %s94 = sphi 0, %s94
      %s96 = sphi 0, %s94
      %s97 = sphi 0, %s96
      %s111 = sphi 0, %s97
      %s115 = sphi 0, %s115
      %s117 = sphi 0, %s115
      %s118 = sphi 0, %s117
      %s132 = sphi 0, %s118
      %s138 = sphi 0, %s140
      %s141 = sphi 0, %s138
      %s142 = sphi 0, %s141
      %s158 = sphi 0, %s142
    $region4: #{tpu_custom_call.1} parent=1 // loop_header_branch
      %21 = sbr.rel (%p19) target = $region8
    $region5: #{tpu_custom_call.1} parent=1 // loop_body
      %s23 = ssub.s32 %s18, 1
      %s24 = ssub.s32 %s18, 2
      %s25 = sadd.s32 %s18, 1
      %s26 = ssub.s32 %s18, %s25
      %p27 = scmp.eq.s32.totalorder %s26, 0
      %s29 = sadd.s32 %s28, 1
      %s30 = scalar_select %p27, %s28, %s29
      %p33 = pneg %p27
      %p34 = scmp.eq.s32.totalorder %s18, 3
      %p35 = por %p33, %p34
      %p36 = scmp.ne.s32.totalorder %s28, %s31
      %p37 = scmp.eq.s32.totalorder %s18, 0
      %p38 = por %p36, %p37
      %p39 = scmp.ne.s32.totalorder %s28, %s31
      %p40 = scmp.eq.s32.totalorder %s23, 3
      %p41 = por %p39, %p40
      %p42 = scmp.ne.s32.totalorder %s31, %s32
      %p43 = scmp.eq.s32.totalorder %s23, 0
      %p44 = por %p42, %p43
      %p45 = scmp.ne.s32.totalorder %s31, %s32
      %p46 = scmp.eq.s32.totalorder %s24, 3
      %p47 = por %p45, %p46
      %p49 = scmp.ne.s32.totalorder %s32, %s48
      %p50 = scmp.eq.s32.totalorder %s24, 0
      %p51 = por %p49, %p50
      %s53 = sadd.s32 %s52, 1
      %p56 = scmp.eq.s32.totalorder %s18, 3
      %p57 = scmp.ne.s32.totalorder %s52, %s54
      %p58 = scmp.eq.s32.totalorder %s18, 0
      %p59 = por %p57, %p58
      %p60 = scmp.ne.s32.totalorder %s52, %s54
      %p61 = scmp.eq.s32.totalorder %s23, 3
      %p62 = por %p60, %p61
      %p63 = scmp.ne.s32.totalorder %s54, %s55
      %p64 = scmp.eq.s32.totalorder %s23, 0
      %p65 = por %p63, %p64
      %p66 = scmp.ne.s32.totalorder %s54, %s55
      %p67 = scmp.eq.s32.totalorder %s24, 3
      %p68 = por %p66, %p67
      %p70 = scmp.ne.s32.totalorder %s55, %s69
      %p71 = scmp.eq.s32.totalorder %s24, 0
      %p72 = por %p70, %p71
      %s74 = sadd.s32 %s73, 1
      %p77 = scmp.eq.s32.totalorder %s18, 3
      %p78 = scmp.ne.s32.totalorder %s73, %s75
      %p79 = scmp.eq.s32.totalorder %s18, 0
      %p80 = por %p78, %p79
      %p81 = scmp.ne.s32.totalorder %s73, %s75
      %p82 = scmp.eq.s32.totalorder %s23, 3
      %p83 = por %p81, %p82
      %p84 = scmp.ne.s32.totalorder %s75, %s76
      %p85 = scmp.eq.s32.totalorder %s23, 0
      %p86 = por %p84, %p85
      %p87 = scmp.ne.s32.totalorder %s75, %s76
      %p88 = scmp.eq.s32.totalorder %s24, 3
      %p89 = por %p87, %p88
      %p91 = scmp.ne.s32.totalorder %s76, %s90
      %p92 = scmp.eq.s32.totalorder %s24, 0
      %p93 = por %p91, %p92
      %s95 = sadd.s32 %s94, 1
      %p98 = scmp.eq.s32.totalorder %s18, 3
      %p99 = scmp.ne.s32.totalorder %s94, %s96
      %p100 = scmp.eq.s32.totalorder %s18, 0
      %p101 = por %p99, %p100
      %p102 = scmp.ne.s32.totalorder %s94, %s96
      %p103 = scmp.eq.s32.totalorder %s23, 3
      %p104 = por %p102, %p103
      %p105 = scmp.ne.s32.totalorder %s96, %s97
      %p106 = scmp.eq.s32.totalorder %s23, 0
      %p107 = por %p105, %p106
      %p108 = scmp.ne.s32.totalorder %s96, %s97
      %p109 = scmp.eq.s32.totalorder %s24, 3
      %p110 = por %p108, %p109
      %p112 = scmp.ne.s32.totalorder %s97, %s111
      %p113 = scmp.eq.s32.totalorder %s24, 0
      %p114 = por %p112, %p113
      %s116 = sadd.s32 %s115, 1
      %p119 = scmp.eq.s32.totalorder %s18, 3
      %p120 = scmp.ne.s32.totalorder %s115, %s117
      %p121 = scmp.eq.s32.totalorder %s18, 0
      %p122 = por %p120, %p121
      %p123 = scmp.ne.s32.totalorder %s115, %s117
      %p124 = scmp.eq.s32.totalorder %s23, 3
      %p125 = por %p123, %p124
      %p126 = scmp.ne.s32.totalorder %s117, %s118
      %p127 = scmp.eq.s32.totalorder %s23, 0
      %p128 = por %p126, %p127
      %p129 = scmp.ne.s32.totalorder %s117, %s118
      %p130 = scmp.eq.s32.totalorder %s24, 3
      %p131 = por %p129, %p130
      %p133 = scmp.ne.s32.totalorder %s118, %s132
      %p134 = scmp.eq.s32.totalorder %s24, 0
      %p135 = por %p133, %p134
      %s136 = ssub.s32 %s18, %s25
      %p137 = scmp.eq.s32.totalorder %s136, 0
      %s139 = sadd.s32 %s138, 1
      %s140 = scalar_select %p137, %s138, %s139
      %p143 = pneg %p137
      %p144 = scmp.eq.s32.totalorder %s18, 3
      %p145 = por %p143, %p144
      %p146 = scmp.ne.s32.totalorder %s138, %s141
      %p147 = scmp.eq.s32.totalorder %s18, 0
      %p148 = por %p146, %p147
      %p149 = scmp.ne.s32.totalorder %s138, %s141
      %p150 = scmp.eq.s32.totalorder %s23, 3
      %p151 = por %p149, %p150
      %p152 = scmp.ne.s32.totalorder %s141, %s142
      %p153 = scmp.eq.s32.totalorder %s23, 0
      %p154 = por %p152, %p153
      %p155 = scmp.ne.s32.totalorder %s141, %s142
      %p156 = scmp.eq.s32.totalorder %s24, 3
      %p157 = por %p155, %p156
      %p159 = scmp.ne.s32.totalorder %s142, %s158
      %p160 = scmp.eq.s32.totalorder %s24, 0
      %p161 = por %p159, %p160
      %p162 = scmp.le.s32.totalorder 1, %s18
      %p163 = scmp.lt.s32.totalorder %s18, 5
      %p164 = pnand %p162, %p163
      %p165 = pneg %p164
      // Predicated region
      $region9: #{tpu_custom_call.1} parent=5 // pred_check
        _
      $region10: #{tpu_custom_call.1} parent=5 // pred_check_branch
        %167 = sbr.rel (%p164) target = $region12
      $region11: #{tpu_custom_call.1} parent=5 // pred_region
        %s168 = ssub.s32 %s18, 1
        // Predicated region
        $region13: #{tpu_custom_call.1} parent=11 // pred_check
          %p169 = pneg %p65
        $region14: #{tpu_custom_call.1} parent=11 // pred_check_branch
          %171 = sbr.rel (%p169) target = $region16
        $region15: #{tpu_custom_call.1} parent=11 // pred_region
          %s173 = ssub.s32 3072, 3072
          %174 = vsyncadd [#allocation6], %s173
          %s175 = sshll.u32 [#allocation5], 4
          %s176 = int_to_ptr.vmem [resolvable:$true] %s175
          %181 = dma.hbm_to_vmem [thread:$0]  %s1, 3072, %s176, [#allocation6], 64, 64, 4
        $region16: #{tpu_custom_call.1} parent=11 // pred_fallthru
          _
        // Predicated region
        $region17: #{tpu_custom_call.1} parent=11 // pred_check
          %p182 = pneg %p86
        $region18: #{tpu_custom_call.1} parent=11 // pred_check_branch
          %184 = sbr.rel (%p182) target = $region20
        $region19: #{tpu_custom_call.1} parent=11 // pred_region
          _
        $region20: #{tpu_custom_call.1} parent=11 // pred_fallthru
          _
        // Predicated region
        $region21: #{tpu_custom_call.1} parent=11 // pred_check
          %p185 = pneg %p107
        $region22: #{tpu_custom_call.1} parent=11 // pred_check_branch
          %187 = sbr.rel (%p185) target = $region24
        $region23: #{tpu_custom_call.1} parent=11 // pred_region
          %s189 = ssub.s32 3072, 3072
          %190 = vsyncadd [#allocation6], %s189
          %s191 = sshll.u32 [#allocation7], 4
          %s192 = int_to_ptr.vmem [resolvable:$true] %s191
          %197 = dma.hbm_to_vmem [thread:$0]  %s3, 3072, %s192, [#allocation6], 64, 64, 4
        $region24: #{tpu_custom_call.1} parent=11 // pred_fallthru
          _
        // Predicated region
        $region25: #{tpu_custom_call.1} parent=11 // pred_check
          %p198 = pneg %p128
        $region26: #{tpu_custom_call.1} parent=11 // pred_check_branch
          %200 = sbr.rel (%p198) target = $region28
        $region27: #{tpu_custom_call.1} parent=11 // pred_region
          _
        $region28: #{tpu_custom_call.1} parent=11 // pred_fallthru
          _
      $region12: #{tpu_custom_call.1} parent=5 // pred_fallthru
        _
      %p201 = scmp.lt.s32.totalorder %s18, 4
      // Predicated region
      $region29: #{tpu_custom_call.1} parent=5 // pred_check
        %p202 = pneg %p201
      $region30: #{tpu_custom_call.1} parent=5 // pred_check_branch
        %204 = sbr.rel (%p202) target = $region32
      $region31: #{tpu_custom_call.1} parent=5 // pred_region
        // Predicated region
        $region33: #{tpu_custom_call.1} parent=31 // pred_check
          %p205 = pneg %p38
        $region34: #{tpu_custom_call.1} parent=31 // pred_check_branch
          %207 = sbr.rel (%p205) target = $region36
        $region35: #{tpu_custom_call.1} parent=31 // pred_region
          %s208 = sand.u32 %s28, 1
          %s209 = scalar_lea.sflag [#allocation3], %s208
          %s210 = sand.u32 %s28, 1
          %s211 = smul.addr %s210, 128
          %s212 = scalar_lea.vmem [#allocation2], %s211
          %s213 = smul.u32 16, %s18
          %s215 = ssub.s32 2048, 2048
          %216 = vsyncadd %s209, %s215
          %s217 = smul.addr %s213, 128
          %s218 = scalar_lea.hbm %s0, %s217
          %s219 = sshll.u32 %s212, 4
          %s220 = int_to_ptr.vmem [resolvable:$true] %s219
          %225 = dma.hbm_to_vmem [thread:$0]  %s218, 2048, %s220, %s209, 128, 128, 8
        $region36: #{tpu_custom_call.1} parent=31 // pred_fallthru
          _
      $region32: #{tpu_custom_call.1} parent=5 // pred_fallthru
        _
      %p226 = scmp.le.s32.totalorder 1, %s18
      %p227 = scmp.lt.s32.totalorder %s18, 5
      %p228 = pnand %p226, %p227
      %p229 = pneg %p228
      // Predicated region
      $region37: #{tpu_custom_call.1} parent=5 // pred_check
        _
      $region38: #{tpu_custom_call.1} parent=5 // pred_check_branch
        %231 = sbr.rel (%p228) target = $region40
      $region39: #{tpu_custom_call.1} parent=5 // pred_region
        %s232 = ssub.s32 %s18, 1
        %s233 = sand.u32 %s31, 1
        %s234 = scalar_lea.sflag [#allocation3], %s233
        %s235 = sand.u32 %s31, 1
        %s236 = smul.addr %s235, 128
        %s237 = scalar_lea.vmem [#allocation2], %s236
        // Predicated region
        $region41: #{tpu_custom_call.1} parent=39 // pred_check
          %p238 = pneg %p44
        $region42: #{tpu_custom_call.1} parent=39 // pred_check_branch
          %240 = sbr.rel (%p238) target = $region44
        $region43: #{tpu_custom_call.1} parent=39 // pred_region
          %241 = dma.done %s234, 2048
        $region44: #{tpu_custom_call.1} parent=39 // pred_fallthru
          _
        // Predicated region
        $region45: #{tpu_custom_call.1} parent=39 // pred_check
          %p242 = pneg %p65
        $region46: #{tpu_custom_call.1} parent=39 // pred_check_branch
          %244 = sbr.rel (%p242) target = $region48
        $region47: #{tpu_custom_call.1} parent=39 // pred_region
          %245 = dma.done [#allocation6], 3072
        $region48: #{tpu_custom_call.1} parent=39 // pred_fallthru
          _
        // Predicated region
        $region49: #{tpu_custom_call.1} parent=39 // pred_check
          %p246 = pneg %p107
        $region50: #{tpu_custom_call.1} parent=39 // pred_check_branch
          %248 = sbr.rel (%p246) target = $region52
        $region51: #{tpu_custom_call.1} parent=39 // pred_region
          %249 = dma.done [#allocation6], 3072
        $region52: #{tpu_custom_call.1} parent=39 // pred_fallthru
          _
        %s250 = sand.u32 %s31, 1
        %s251 = scalar_lea.sflag [#allocation3], %s250
        %s252 = sand.u32 %s31, 1
        %s253 = smul.addr %s252, 128
        %s254 = scalar_lea.vmem [#allocation2], %s253
        %p255 = pneg %p44
        %p256 = pneg %p41
        %p257 = pneg %p65
        %p258 = pneg %p62
        %p259 = pneg %p86
        %p260 = pneg %p83
        %p261 = pneg %p107
        %p262 = pneg %p104
        %p263 = pneg %p128
        %p264 = pneg %p125
        %p265 = pneg %p154
        %p266 = pneg %p151
        %s267 = sand.u32 %s141, 1
        %s268 = scalar_lea.sflag [#allocation4], %s267
        %s269 = sand.u32 %s141, 1
        %s270 = smul.addr %s269, 128
        %s271 = scalar_lea.vmem [#allocation8], %s270
        %s272 = smul.u32 16, %s23
        %s273 = smul.u32 16, %s23
        %v275 = vld [vmem:[%s237] sm:$0xff]
        %v276 = vld [vmem:[%s237 + $0x8] sm:$0xff]
        %v277 = vld [vmem:[%s237 + $0x10] sm:$0xff]
        %v278 = vld [vmem:[%s237 + $0x18] sm:$0xff]
        %v279 = vld [vmem:[%s237 + $0x20] sm:$0xff]
        %v280 = vld [vmem:[%s237 + $0x28] sm:$0xff]
        %v281 = vld [vmem:[%s237 + $0x30] sm:$0xff]
        %v282 = vld [vmem:[%s237 + $0x38] sm:$0xff]
        %v283 = vld [vmem:[%s237 + $0x40] sm:$0xff]
        %v284 = vld [vmem:[%s237 + $0x48] sm:$0xff]
        %v285 = vld [vmem:[%s237 + $0x50] sm:$0xff]
        %v286 = vld [vmem:[%s237 + $0x58] sm:$0xff]
        %v287 = vld [vmem:[%s237 + $0x60] sm:$0xff]
        %v288 = vld [vmem:[%s237 + $0x68] sm:$0xff]
        %v289 = vld [vmem:[%s237 + $0x70] sm:$0xff]
        %v290 = vld [vmem:[%s237 + $0x78] sm:$0xff]
        %v291 = vlaneseq
        %v292 = vshrl.u32 %v291, 7
        %v293 = vadd.s32 %v292, 8
        %v294 = vadd.s32 %v292, 16
        %v295 = vadd.s32 %v292, 24
        %v296 = vadd.s32 %v292, 32
        %v297 = vadd.s32 %v292, 40
        %v298 = vadd.s32 %v292, 48
        %v299 = vadd.s32 %v292, 56
        %v300 = vadd.s32 %v292, 64
        %v301 = vadd.s32 %v292, 72
        %v302 = vadd.s32 %v292, 80
        %v303 = vadd.s32 %v292, 88
        %v304 = vadd.s32 %v292, 96
        %v305 = vadd.s32 %v292, 104
        %v306 = vadd.s32 %v292, 112
        %v307 = vadd.s32 %v292, 120
        %vm308 = vcmp.lt.s32.totalorder %v292, 0
        %v309 = vsub.s32 0, %v292
        %v310 = vsel %vm308, %v309, %v292
        %v311 = vshrl.u32 %v310, 4
        %v312 = vand.u32 %v310, 15
        %v313 = vsub.s32 0, %v312
        %v314 = vsel %vm308, %v313, %v312
        %vm315 = vcmp.lt.s32.totalorder %v293, 0
        %v316 = vsub.s32 0, %v293
        %v317 = vsel %vm315, %v316, %v293
        %v318 = vshrl.u32 %v317, 4
        %v319 = vand.u32 %v317, 15
        %v320 = vsub.s32 0, %v319
        %v321 = vsel %vm315, %v320, %v319
        %vm322 = vcmp.lt.s32.totalorder %v294, 0
        %v323 = vsub.s32 0, %v294
        %v324 = vsel %vm322, %v323, %v294
        %v325 = vshrl.u32 %v324, 4
        %v326 = vand.u32 %v324, 15
        %v327 = vsub.s32 0, %v326
        %v328 = vsel %vm322, %v327, %v326
        %vm329 = vcmp.lt.s32.totalorder %v295, 0
        %v330 = vsub.s32 0, %v295
        %v331 = vsel %vm329, %v330, %v295
        %v332 = vshrl.u32 %v331, 4
        %v333 = vand.u32 %v331, 15
        %v334 = vsub.s32 0, %v333
        %v335 = vsel %vm329, %v334, %v333
        %vm336 = vcmp.lt.s32.totalorder %v296, 0
        %v337 = vsub.s32 0, %v296
        %v338 = vsel %vm336, %v337, %v296
        %v339 = vshrl.u32 %v338, 4
        %v340 = vand.u32 %v338, 15
        %v341 = vsub.s32 0, %v340
        %v342 = vsel %vm336, %v341, %v340
        %vm343 = vcmp.lt.s32.totalorder %v297, 0
        %v344 = vsub.s32 0, %v297
        %v345 = vsel %vm343, %v344, %v297
        %v346 = vshrl.u32 %v345, 4
        %v347 = vand.u32 %v345, 15
        %v348 = vsub.s32 0, %v347
        %v349 = vsel %vm343, %v348, %v347
        %vm350 = vcmp.lt.s32.totalorder %v298, 0
        %v351 = vsub.s32 0, %v298
        %v352 = vsel %vm350, %v351, %v298
        %v353 = vshrl.u32 %v352, 4
        %v354 = vand.u32 %v352, 15
        %v355 = vsub.s32 0, %v354
        %v356 = vsel %vm350, %v355, %v354
        %vm357 = vcmp.lt.s32.totalorder %v299, 0
        %v358 = vsub.s32 0, %v299
        %v359 = vsel %vm357, %v358, %v299
        %v360 = vshrl.u32 %v359, 4
        %v361 = vand.u32 %v359, 15
        %v362 = vsub.s32 0, %v361
        %v363 = vsel %vm357, %v362, %v361
        %vm364 = vcmp.lt.s32.totalorder %v300, 0
        %v365 = vsub.s32 0, %v300
        %v366 = vsel %vm364, %v365, %v300
        %v367 = vshrl.u32 %v366, 4
        %v368 = vand.u32 %v366, 15
        %v369 = vsub.s32 0, %v368
        %v370 = vsel %vm364, %v369, %v368
        %vm371 = vcmp.lt.s32.totalorder %v301, 0
        %v372 = vsub.s32 0, %v301
        %v373 = vsel %vm371, %v372, %v301
        %v374 = vshrl.u32 %v373, 4
        %v375 = vand.u32 %v373, 15
        %v376 = vsub.s32 0, %v375
        %v377 = vsel %vm371, %v376, %v375
        %vm378 = vcmp.lt.s32.totalorder %v302, 0
        %v379 = vsub.s32 0, %v302
        %v380 = vsel %vm378, %v379, %v302
        %v381 = vshrl.u32 %v380, 4
        %v382 = vand.u32 %v380, 15
        %v383 = vsub.s32 0, %v382
        %v384 = vsel %vm378, %v383, %v382
        %vm385 = vcmp.lt.s32.totalorder %v303, 0
        %v386 = vsub.s32 0, %v303
        %v387 = vsel %vm385, %v386, %v303
        %v388 = vshrl.u32 %v387, 4
        %v389 = vand.u32 %v387, 15
        %v390 = vsub.s32 0, %v389
        %v391 = vsel %vm385, %v390, %v389
        %vm392 = vcmp.lt.s32.totalorder %v304, 0
        %v393 = vsub.s32 0, %v304
        %v394 = vsel %vm392, %v393, %v304
        %v395 = vshrl.u32 %v394, 4
        %v396 = vand.u32 %v394, 15
        %v397 = vsub.s32 0, %v396
        %v398 = vsel %vm392, %v397, %v396
        %vm399 = vcmp.lt.s32.totalorder %v305, 0
        %v400 = vsub.s32 0, %v305
        %v401 = vsel %vm399, %v400, %v305
        %v402 = vshrl.u32 %v401, 4
        %v403 = vand.u32 %v401, 15
        %v404 = vsub.s32 0, %v403
        %v405 = vsel %vm399, %v404, %v403
        %vm406 = vcmp.lt.s32.totalorder %v306, 0
        %v407 = vsub.s32 0, %v306
        %v408 = vsel %vm406, %v407, %v306
        %v409 = vshrl.u32 %v408, 4
        %v410 = vand.u32 %v408, 15
        %v411 = vsub.s32 0, %v410
        %v412 = vsel %vm406, %v411, %v410
        %vm413 = vcmp.lt.s32.totalorder %v307, 0
        %v414 = vsub.s32 0, %v307
        %v415 = vsel %vm413, %v414, %v307
        %v416 = vshrl.u32 %v415, 4
        %v417 = vand.u32 %v415, 15
        %v418 = vsub.s32 0, %v417
        %v419 = vsel %vm413, %v418, %v417
        %vm420 = vcmp.ne.s32.totalorder %v314, 0
        %vm421 = vcmp.ne.s32.totalorder %v321, 0
        %vm422 = vcmp.ne.s32.totalorder %v328, 0
        %vm423 = vcmp.ne.s32.totalorder %v335, 0
        %vm424 = vcmp.ne.s32.totalorder %v342, 0
        %vm425 = vcmp.ne.s32.totalorder %v349, 0
        %vm426 = vcmp.ne.s32.totalorder %v356, 0
        %vm427 = vcmp.ne.s32.totalorder %v363, 0
        %vm428 = vcmp.ne.s32.totalorder %v370, 0
        %vm429 = vcmp.ne.s32.totalorder %v377, 0
        %vm430 = vcmp.ne.s32.totalorder %v384, 0
        %vm431 = vcmp.ne.s32.totalorder %v391, 0
        %vm432 = vcmp.ne.s32.totalorder %v398, 0
        %vm433 = vcmp.ne.s32.totalorder %v405, 0
        %vm434 = vcmp.ne.s32.totalorder %v412, 0
        %vm435 = vcmp.ne.s32.totalorder %v419, 0
        %vm436 = vcmp.lt.s32.totalorder %v314, 0
        %vm437 = vcmp.lt.s32.totalorder %v321, 0
        %vm438 = vcmp.lt.s32.totalorder %v328, 0
        %vm439 = vcmp.lt.s32.totalorder %v335, 0
        %vm440 = vcmp.lt.s32.totalorder %v342, 0
        %vm441 = vcmp.lt.s32.totalorder %v349, 0
        %vm442 = vcmp.lt.s32.totalorder %v356, 0
        %vm443 = vcmp.lt.s32.totalorder %v363, 0
        %vm444 = vcmp.lt.s32.totalorder %v370, 0
        %vm445 = vcmp.lt.s32.totalorder %v377, 0
        %vm446 = vcmp.lt.s32.totalorder %v384, 0
        %vm447 = vcmp.lt.s32.totalorder %v391, 0
        %vm448 = vcmp.lt.s32.totalorder %v398, 0
        %vm449 = vcmp.lt.s32.totalorder %v405, 0
        %vm450 = vcmp.lt.s32.totalorder %v412, 0
        %vm451 = vcmp.lt.s32.totalorder %v419, 0
        %vm452 = vmand %vm436, %vm420
        %vm453 = vmand %vm437, %vm421
        %vm454 = vmand %vm438, %vm422
        %vm455 = vmand %vm439, %vm423
        %vm456 = vmand %vm440, %vm424
        %vm457 = vmand %vm441, %vm425
        %vm458 = vmand %vm442, %vm426
        %vm459 = vmand %vm443, %vm427
        %vm460 = vmand %vm444, %vm428
        %vm461 = vmand %vm445, %vm429
        %vm462 = vmand %vm446, %vm430
        %vm463 = vmand %vm447, %vm431
        %vm464 = vmand %vm448, %vm432
        %vm465 = vmand %vm449, %vm433
        %vm466 = vmand %vm450, %vm434
        %vm467 = vmand %vm451, %vm435
        %v468 = vadd.s32 %v314, 16
        %v469 = vadd.s32 %v321, 16
        %v470 = vadd.s32 %v328, 16
        %v471 = vadd.s32 %v335, 16
        %v472 = vadd.s32 %v342, 16
        %v473 = vadd.s32 %v349, 16
        %v474 = vadd.s32 %v356, 16
        %v475 = vadd.s32 %v363, 16
        %v476 = vadd.s32 %v370, 16
        %v477 = vadd.s32 %v377, 16
        %v478 = vadd.s32 %v384, 16
        %v479 = vadd.s32 %v391, 16
        %v480 = vadd.s32 %v398, 16
        %v481 = vadd.s32 %v405, 16
        %v482 = vadd.s32 %v412, 16
        %v483 = vadd.s32 %v419, 16
        %v484 = vsel %vm452, %v468, %v314
        %v485 = vsel %vm453, %v469, %v321
        %v486 = vsel %vm454, %v470, %v328
        %v487 = vsel %vm455, %v471, %v335
        %v488 = vsel %vm456, %v472, %v342
        %v489 = vsel %vm457, %v473, %v349
        %v490 = vsel %vm458, %v474, %v356
        %v491 = vsel %vm459, %v475, %v363
        %v492 = vsel %vm460, %v476, %v370
        %v493 = vsel %vm461, %v477, %v377
        %v494 = vsel %vm462, %v478, %v384
        %v495 = vsel %vm463, %v479, %v391
        %v496 = vsel %vm464, %v480, %v398
        %v497 = vsel %vm465, %v481, %v405
        %v498 = vsel %vm466, %v482, %v412
        %v499 = vsel %vm467, %v483, %v419
        %vm500 = vcmp.ne.s32.totalorder %v484, 0
        %vm501 = vcmp.ne.s32.totalorder %v485, 0
        %vm502 = vcmp.ne.s32.totalorder %v486, 0
        %vm503 = vcmp.ne.s32.totalorder %v487, 0
        %vm504 = vcmp.ne.s32.totalorder %v488, 0
        %vm505 = vcmp.ne.s32.totalorder %v489, 0
        %vm506 = vcmp.ne.s32.totalorder %v490, 0
        %vm507 = vcmp.ne.s32.totalorder %v491, 0
        %vm508 = vcmp.ne.s32.totalorder %v492, 0
        %vm509 = vcmp.ne.s32.totalorder %v493, 0
        %vm510 = vcmp.ne.s32.totalorder %v494, 0
        %vm511 = vcmp.ne.s32.totalorder %v495, 0
        %vm512 = vcmp.ne.s32.totalorder %v496, 0
        %vm513 = vcmp.ne.s32.totalorder %v497, 0
        %vm514 = vcmp.ne.s32.totalorder %v498, 0
        %vm515 = vcmp.ne.s32.totalorder %v499, 0
        %vm516 = vcmp.ne.s32.totalorder %v484, 15
        %vm517 = vcmp.ne.s32.totalorder %v485, 15
        %vm518 = vcmp.ne.s32.totalorder %v486, 15
        %vm519 = vcmp.ne.s32.totalorder %v487, 15
        %vm520 = vcmp.ne.s32.totalorder %v488, 15
        %vm521 = vcmp.ne.s32.totalorder %v489, 15
        %vm522 = vcmp.ne.s32.totalorder %v490, 15
        %vm523 = vcmp.ne.s32.totalorder %v491, 15
        %vm524 = vcmp.ne.s32.totalorder %v492, 15
        %vm525 = vcmp.ne.s32.totalorder %v493, 15
        %vm526 = vcmp.ne.s32.totalorder %v494, 15
        %vm527 = vcmp.ne.s32.totalorder %v495, 15
        %vm528 = vcmp.ne.s32.totalorder %v496, 15
        %vm529 = vcmp.ne.s32.totalorder %v497, 15
        %vm530 = vcmp.ne.s32.totalorder %v498, 15
        %vm531 = vcmp.ne.s32.totalorder %v499, 15
        %v532 = vmax.f32 %v275, 0.0
        %v533 = vmax.f32 %v276, 0.0
        %v534 = vmax.f32 %v277, 0.0
        %v535 = vmax.f32 %v278, 0.0
        %v536 = vmax.f32 %v279, 0.0
        %v537 = vmax.f32 %v280, 0.0
        %v538 = vmax.f32 %v281, 0.0
        %v539 = vmax.f32 %v282, 0.0
        %v540 = vmax.f32 %v283, 0.0
        %v541 = vmax.f32 %v284, 0.0
        %v542 = vmax.f32 %v285, 0.0
        %v543 = vmax.f32 %v286, 0.0
        %v544 = vmax.f32 %v287, 0.0
        %v545 = vmax.f32 %v288, 0.0
        %v546 = vmax.f32 %v289, 0.0
        %v547 = vmax.f32 %v290, 0.0
        %v548 = vpack.c.bf16 %v533, %v532
        %v549 = vpack.c.bf16 %v535, %v534
        %v550 = vpack.c.bf16 %v537, %v536
        %v551 = vpack.c.bf16 %v539, %v538
        %v552 = vpack.c.bf16 %v541, %v540
        %v553 = vpack.c.bf16 %v543, %v542
        %v554 = vpack.c.bf16 %v545, %v544
        %v555 = vpack.c.bf16 %v547, %v546
        %s556 = scalar_lea.vmem [#allocation5], 64
        %v557 = vld [vmem:[%s556] sm:$0xf]
        %v558 = vld [vmem:[%s556 + $0x4] sm:$0xf]
        %v559 = vld [vmem:[%s556 + $0x8] sm:$0xf]
        %v560 = vld [vmem:[%s556 + $0xc] sm:$0xf]
        %v561 = vld [vmem:[%s556 + $0x10] sm:$0xf]
        %v562 = vld [vmem:[%s556 + $0x14] sm:$0xf]
        %v563 = vld [vmem:[%s556 + $0x18] sm:$0xf]
        %v564 = vld [vmem:[%s556 + $0x1c] sm:$0xf]
        %v565 = vld [vmem:[%s556 + $0x20] sm:$0xf]
        %v566 = vld [vmem:[%s556 + $0x24] sm:$0xf]
        %v567 = vld [vmem:[%s556 + $0x28] sm:$0xf]
        %v568 = vld [vmem:[%s556 + $0x2c] sm:$0xf]
        %v569 = vld [vmem:[%s556 + $0x30] sm:$0xf]
        %v570 = vld [vmem:[%s556 + $0x34] sm:$0xf]
        %v571 = vld [vmem:[%s556 + $0x38] sm:$0xf]
        %v572 = vld [vmem:[%s556 + $0x3c] sm:$0xf]
        %v573 = vld [vmem:[#allocation5] sm:$0xf]
        %v574 = vld [vmem:[#allocation5 + $0x4] sm:$0xf]
        %v575 = vld [vmem:[#allocation5 + $0x8] sm:$0xf]
        %v576 = vld [vmem:[#allocation5 + $0xc] sm:$0xf]
        %v577 = vld [vmem:[#allocation5 + $0x10] sm:$0xf]
        %v578 = vld [vmem:[#allocation5 + $0x14] sm:$0xf]
        %v579 = vld [vmem:[#allocation5 + $0x18] sm:$0xf]
        %v580 = vld [vmem:[#allocation5 + $0x1c] sm:$0xf]
        %v581 = vld [vmem:[#allocation5 + $0x20] sm:$0xf]
        %v582 = vld [vmem:[#allocation5 + $0x24] sm:$0xf]
        %v583 = vld [vmem:[#allocation5 + $0x28] sm:$0xf]
        %v584 = vld [vmem:[#allocation5 + $0x2c] sm:$0xf]
        %v585 = vld [vmem:[#allocation5 + $0x30] sm:$0xf]
        %v586 = vld [vmem:[#allocation5 + $0x34] sm:$0xf]
        %v587 = vld [vmem:[#allocation5 + $0x38] sm:$0xf]
        %v588 = vld [vmem:[#allocation5 + $0x3c] sm:$0xf]
        %v605 = vunpack.c.l.b16 %v573
        %v606 = vunpack.c.l.b16 %v574
        %v607 = vunpack.c.l.b16 %v575
        %v608 = vunpack.c.l.b16 %v576
        %v609 = vunpack.c.l.b16 %v577
        %v610 = vunpack.c.l.b16 %v578
        %v611 = vunpack.c.l.b16 %v579
        %v612 = vunpack.c.l.b16 %v580
        %v613 = vunpack.c.l.b16 %v581
        %v614 = vunpack.c.l.b16 %v582
        %v615 = vunpack.c.l.b16 %v583
        %v616 = vunpack.c.l.b16 %v584
        %v617 = vunpack.c.l.b16 %v585
        %v618 = vunpack.c.l.b16 %v586
        %v619 = vunpack.c.l.b16 %v587
        %v620 = vunpack.c.l.b16 %v588
        %v621 = vpack.c.b16 %v606, %v605
        %v622 = vpack.c.b16 %v608, %v607
        %v623 = vpack.c.b16 %v610, %v609
        %v624 = vpack.c.b16 %v612, %v611
        %v625 = vpack.c.b16 %v614, %v613
        %v626 = vpack.c.b16 %v616, %v615
        %v627 = vpack.c.b16 %v618, %v617
        %v628 = vpack.c.b16 %v620, %v619
        %637 = vmatprep.subr.bf16.mxu0 0
        %638 = vmatpush1.bf16.msra.mxu0 %v621
        %639 = vmatprep.subr.bf16.mxu0 0
        %640 = vmatpush1.bf16.msra.mxu0 %v622
        %641 = vmatprep.subr.bf16.mxu0 0
        %642 = vmatpush1.bf16.msra.mxu0 %v623
        %643 = vmatprep.subr.bf16.mxu0 0
        %644 = vmatpush1.bf16.msra.mxu0 %v624
        %645 = vmatprep.subr.bf16.mxu0 0
        %646 = vmatpush1.bf16.msra.mxu0 %v625
        %647 = vmatprep.subr.bf16.mxu0 0
        %648 = vmatpush1.bf16.msra.mxu0 %v626
        %649 = vmatprep.subr.bf16.mxu0 0
        %650 = vmatpush1.bf16.msra.mxu0 %v627
        %651 = vmatprep.subr.bf16.mxu0 0
        %652 = vmatpush1.bf16.msra.mxu0 %v628
        %653 = vmatprep.subr.bf16.mxu0 0
        %654 = vmatpush1.bf16.msra.mxu0 0
        %655 = vmatprep.subr.bf16.mxu0 0
        %656 = vmatpush1.bf16.msra.mxu0 0
        %657 = vmatprep.subr.bf16.mxu0 0
        %658 = vmatpush1.bf16.msra.mxu0 0
        %659 = vmatprep.subr.bf16.mxu0 0
        %660 = vmatpush1.bf16.msra.mxu0 0
        %661 = vmatprep.subr.bf16.mxu0 0
        %662 = vmatpush1.bf16.msra.mxu0 0
        %663 = vmatprep.subr.bf16.mxu0 0
        %664 = vmatpush1.bf16.msra.mxu0 0
        %665 = vmatprep.subr.bf16.mxu0 0
        %666 = vmatpush1.bf16.msra.mxu0 0
        %667 = vmatprep.subr.bf16.mxu0 0
        %668 = vmatpush1.bf16.msra.mxu0 0
        %669 = vmatprep.mubr.bf16.mxu0 0
        %670 = vmatmul.mubr.bf16.gmra.mrb[0].mxu0 %v548
        %v671 = vpop.f32.mrb[0].mxu0
        %v672 = vadd.f32 0.0, %v671
        %v673 = vpop.f32.mrb[0].mxu0
        %v674 = vpop.f32.mrb[0].mxu0
        %v675 = vadd.f32 0.0, %v674
        %v676 = vpop.f32.mrb[0].mxu0
        %677 = vmatprep.mubr.bf16.mxu0 0
        %678 = vmatmul.mubr.bf16.gmra.mrb[0].mxu0 %v549
        %v679 = vpop.f32.mrb[0].mxu0
        %v680 = vadd.f32 0.0, %v679
        %v681 = vpop.f32.mrb[0].mxu0
        %v682 = vpop.f32.mrb[0].mxu0
        %v683 = vadd.f32 0.0, %v682
        %v684 = vpop.f32.mrb[0].mxu0
        %685 = vmatprep.mubr.bf16.mxu0 0
        %686 = vmatmul.mubr.bf16.gmra.mrb[0].mxu0 %v550
        %v687 = vpop.f32.mrb[0].mxu0
        %v688 = vadd.f32 0.0, %v687
        %v689 = vpop.f32.mrb[0].mxu0
        %v690 = vpop.f32.mrb[0].mxu0
        %v691 = vadd.f32 0.0, %v690
        %v692 = vpop.f32.mrb[0].mxu0
        %693 = vmatprep.mubr.bf16.mxu0 0
        %694 = vmatmul.mubr.bf16.gmra.mrb[0].mxu0 %v551
        %v695 = vpop.f32.mrb[0].mxu0
        %v696 = vadd.f32 0.0, %v695
        %v697 = vpop.f32.mrb[0].mxu0
        %v698 = vpop.f32.mrb[0].mxu0
        %v699 = vadd.f32 0.0, %v698
        %v700 = vpop.f32.mrb[0].mxu0
        %701 = vmatprep.mubr.bf16.mxu0 0
        %702 = vmatmul.mubr.bf16.gmra.mrb[0].mxu0 %v552
        %v703 = vpop.f32.mrb[0].mxu0
        %v704 = vadd.f32 0.0, %v703
        %v705 = vpop.f32.mrb[0].mxu0
        %v706 = vpop.f32.mrb[0].mxu0
        %v707 = vadd.f32 0.0, %v706
        %v708 = vpop.f32.mrb[0].mxu0
        %709 = vmatprep.mubr.bf16.mxu0 0
        %710 = vmatmul.mubr.bf16.gmra.mrb[0].mxu0 %v553
        %v711 = vpop.f32.mrb[0].mxu0
        %v712 = vadd.f32 0.0, %v711
        %v713 = vpop.f32.mrb[0].mxu0
        %v714 = vpop.f32.mrb[0].mxu0
        %v715 = vadd.f32 0.0, %v714
        %v716 = vpop.f32.mrb[0].mxu0
        %717 = vmatprep.mubr.bf16.mxu0 0
        %718 = vmatmul.mubr.bf16.gmra.mrb[0].mxu0 %v554
        %v719 = vpop.f32.mrb[0].mxu0
        %v720 = vadd.f32 0.0, %v719
        %v721 = vpop.f32.mrb[0].mxu0
        %v722 = vpop.f32.mrb[0].mxu0
        %v723 = vadd.f32 0.0, %v722
        %v724 = vpop.f32.mrb[0].mxu0
        %725 = vmatprep.mubr.bf16.mxu0 0
        %726 = vmatmul.mubr.bf16.gmra.mrb[0].mxu0 %v555
        %v727 = vpop.f32.mrb[0].mxu0
        %v728 = vadd.f32 0.0, %v727
        %v729 = vpop.f32.mrb[0].mxu0
        %v730 = vpop.f32.mrb[0].mxu0
        %v731 = vadd.f32 0.0, %v730
        %v732 = vpop.f32.mrb[0].mxu0
        %733 = vdwg.mxu0
        %s734 = scalar_lea.vmem [#allocation5], 128
        %v735 = vld [vmem:[%s734] sm:$0xf]
        %v736 = vld [vmem:[%s734 + $0x4] sm:$0xf]
        %v737 = vld [vmem:[%s734 + $0x8] sm:$0xf]
        %v738 = vld [vmem:[%s734 + $0xc] sm:$0xf]
        %v739 = vld [vmem:[%s734 + $0x10] sm:$0xf]
        %v740 = vld [vmem:[%s734 + $0x14] sm:$0xf]
        %v741 = vld [vmem:[%s734 + $0x18] sm:$0xf]
        %v742 = vld [vmem:[%s734 + $0x1c] sm:$0xf]
        %v743 = vld [vmem:[%s734 + $0x20] sm:$0xf]
        %v744 = vld [vmem:[%s734 + $0x24] sm:$0xf]
        %v745 = vld [vmem:[%s734 + $0x28] sm:$0xf]
        %v746 = vld [vmem:[%s734 + $0x2c] sm:$0xf]
        %v747 = vld [vmem:[%s734 + $0x30] sm:$0xf]
        %v748 = vld [vmem:[%s734 + $0x34] sm:$0xf]
        %v749 = vld [vmem:[%s734 + $0x38] sm:$0xf]
        %v750 = vld [vmem:[%s734 + $0x3c] sm:$0xf]
        %v767 = vunpack.c.l.b16 %v735
        %v768 = vunpack.c.l.b16 %v736
        %v769 = vunpack.c.l.b16 %v737
        %v770 = vunpack.c.l.b16 %v738
        %v771 = vunpack.c.l.b16 %v739
        %v772 = vunpack.c.l.b16 %v740
        %v773 = vunpack.c.l.b16 %v741
        %v774 = vunpack.c.l.b16 %v742
        %v775 = vunpack.c.l.b16 %v743
        %v776 = vunpack.c.l.b16 %v744
        %v777 = vunpack.c.l.b16 %v745
        %v778 = vunpack.c.l.b16 %v746
        %v779 = vunpack.c.l.b16 %v747
        %v780 = vunpack.c.l.b16 %v748
        %v781 = vunpack.c.l.b16 %v749
        %v782 = vunpack.c.l.b16 %v750
        %v783 = vpack.c.b16 %v768, %v767
        %v784 = vpack.c.b16 %v770, %v769
        %v785 = vpack.c.b16 %v772, %v771
        %v786 = vpack.c.b16 %v774, %v773
        %v787 = vpack.c.b16 %v776, %v775
        %v788 = vpack.c.b16 %v778, %v777
        %v789 = vpack.c.b16 %v780, %v779
        %v790 = vpack.c.b16 %v782, %v781
        %799 = vmatprep.subr.bf16.mxu0 0
        %800 = vmatpush1.bf16.msra.mxu0 %v783
        %801 = vmatprep.subr.bf16.mxu0 0
        %802 = vmatpush1.bf16.msra.mxu0 %v784
        %803 = vmatprep.subr.bf16.mxu0 0
        %804 = vmatpush1.bf16.msra.mxu0 %v785
        %805 = vmatprep.subr.bf16.mxu0 0
        %806 = vmatpush1.bf16.msra.mxu0 %v786
        %807 = vmatprep.subr.bf16.mxu0 0
        %808 = vmatpush1.bf16.msra.mxu0 %v787
        %809 = vmatprep.subr.bf16.mxu0 0
        %810 = vmatpush1.bf16.msra.mxu0 %v788
        %811 = vmatprep.subr.bf16.mxu0 0
        %812 = vmatpush1.bf16.msra.mxu0 %v789
        %813 = vmatprep.subr.bf16.mxu0 0
        %814 = vmatpush1.bf16.msra.mxu0 %v790
        %815 = vmatprep.subr.bf16.mxu0 0
        %816 = vmatpush1.bf16.msra.mxu0 0
        %817 = vmatprep.subr.bf16.mxu0 0
        %818 = vmatpush1.bf16.msra.mxu0 0
        %819 = vmatprep.subr.bf16.mxu0 0
        %820 = vmatpush1.bf16.msra.mxu0 0
        %821 = vmatprep.subr.bf16.mxu0 0
        %822 = vmatpush1.bf16.msra.mxu0 0
        %823 = vmatprep.subr.bf16.mxu0 0
        %824 = vmatpush1.bf16.msra.mxu0 0
        %825 = vmatprep.subr.bf16.mxu0 0
        %826 = vmatpush1.bf16.msra.mxu0 0
        %827 = vmatprep.subr.bf16.mxu0 0
        %828 = vmatpush1.bf16.msra.mxu0 0
        %829 = vmatprep.subr.bf16.mxu0 0
        %830 = vmatpush1.bf16.msra.mxu0 0
        %831 = vmatprep.mubr.bf16.mxu0 0
        %832 = vmatmul.mubr.bf16.gmra.mrb[0].mxu0 %v548
        %v833 = vpop.f32.mrb[0].mxu0
        %v834 = vadd.f32 0.0, %v833
        %v835 = vpop.f32.mrb[0].mxu0
        %v836 = vpop.f32.mrb[0].mxu0
        %v837 = vadd.f32 0.0, %v836
        %v838 = vpop.f32.mrb[0].mxu0
        %839 = vmatprep.mubr.bf16.mxu0 0
        %840 = vmatmul.mubr.bf16.gmra.mrb[0].mxu0 %v549
        %v841 = vpop.f32.mrb[0].mxu0
        %v842 = vadd.f32 0.0, %v841
        %v843 = vpop.f32.mrb[0].mxu0
        %v844 = vpop.f32.mrb[0].mxu0
        %v845 = vadd.f32 0.0, %v844
        %v846 = vpop.f32.mrb[0].mxu0
        %847 = vmatprep.mubr.bf16.mxu0 0
        %848 = vmatmul.mubr.bf16.gmra.mrb[0].mxu0 %v550
        %v849 = vpop.f32.mrb[0].mxu0
        %v850 = vadd.f32 0.0, %v849
        %v851 = vpop.f32.mrb[0].mxu0
        %v852 = vpop.f32.mrb[0].mxu0
        %v853 = vadd.f32 0.0, %v852
        %v854 = vpop.f32.mrb[0].mxu0
        %855 = vmatprep.mubr.bf16.mxu0 0
        %856 = vmatmul.mubr.bf16.gmra.mrb[0].mxu0 %v551
        %v857 = vpop.f32.mrb[0].mxu0
        %v858 = vadd.f32 0.0, %v857
        %v859 = vpop.f32.mrb[0].mxu0
        %v860 = vpop.f32.mrb[0].mxu0
        %v861 = vadd.f32 0.0, %v860
        %v862 = vpop.f32.mrb[0].mxu0
        %863 = vmatprep.mubr.bf16.mxu0 0
        %864 = vmatmul.mubr.bf16.gmra.mrb[0].mxu0 %v552
        %v865 = vpop.f32.mrb[0].mxu0
        %v866 = vadd.f32 0.0, %v865
        %v867 = vpop.f32.mrb[0].mxu0
        %v868 = vpop.f32.mrb[0].mxu0
        %v869 = vadd.f32 0.0, %v868
        %v870 = vpop.f32.mrb[0].mxu0
        %871 = vmatprep.mubr.bf16.mxu0 0
        %872 = vmatmul.mubr.bf16.gmra.mrb[0].mxu0 %v553
        %v873 = vpop.f32.mrb[0].mxu0
        %v874 = vadd.f32 0.0, %v873
        %v875 = vpop.f32.mrb[0].mxu0
        %v876 = vpop.f32.mrb[0].mxu0
        %v877 = vadd.f32 0.0, %v876
        %v878 = vpop.f32.mrb[0].mxu0
        %879 = vmatprep.mubr.bf16.mxu0 0
        %880 = vmatmul.mubr.bf16.gmra.mrb[0].mxu0 %v554
        %v881 = vpop.f32.mrb[0].mxu0
        %v882 = vadd.f32 0.0, %v881
        %v883 = vpop.f32.mrb[0].mxu0
        %v884 = vpop.f32.mrb[0].mxu0
        %v885 = vadd.f32 0.0, %v884
        %v886 = vpop.f32.mrb[0].mxu0
        %887 = vmatprep.mubr.bf16.mxu0 0
        %888 = vmatmul.mubr.bf16.gmra.mrb[0].mxu0 %v555
        %v889 = vpop.f32.mrb[0].mxu0
        %v890 = vadd.f32 0.0, %v889
        %v891 = vpop.f32.mrb[0].mxu0
        %v892 = vpop.f32.mrb[0].mxu0
        %v893 = vadd.f32 0.0, %v892
        %v894 = vpop.f32.mrb[0].mxu0
        %895 = vdwg.mxu0
        %v896 = vrot.slane %v672, 7
        %v897 = vrot.slane %v675, 7
        %v898 = vrot.slane %v680, 7
        %v899 = vrot.slane %v683, 7
        %v900 = vrot.slane %v688, 7
        %v901 = vrot.slane %v691, 7
        %v902 = vrot.slane %v696, 7
        %v903 = vrot.slane %v699, 7
        %v904 = vrot.slane %v704, 7
        %v905 = vrot.slane %v707, 7
        %v906 = vrot.slane %v712, 7
        %v907 = vrot.slane %v715, 7
        %v908 = vrot.slane %v720, 7
        %v909 = vrot.slane %v723, 7
        %v910 = vrot.slane %v728, 7
        %v911 = vrot.slane %v731, 7
        %vm912 = vcmp.lt.s32.totalorder %v292, 1
        %v913 = vsel %vm912, %v910, %v911
        %v914 = vsel %vm912, %v909, %v910
        %v915 = vsel %vm912, %v908, %v909
        %v916 = vsel %vm912, %v907, %v908
        %v917 = vsel %vm912, %v906, %v907
        %v918 = vsel %vm912, %v905, %v906
        %v919 = vsel %vm912, %v904, %v905
        %v920 = vsel %vm912, %v903, %v904
        %v921 = vsel %vm912, %v902, %v903
        %v922 = vsel %vm912, %v901, %v902
        %v923 = vsel %vm912, %v900, %v901
        %v924 = vsel %vm912, %v899, %v900
        %v925 = vsel %vm912, %v898, %v899
        %v926 = vsel %vm912, %v897, %v898
        %v927 = vsel %vm912, %v896, %v897
        %v928 = vsel %vm912, %v911, %v896
        %v929 = vsel %vm500, 1, 0
        %v930 = vsel %vm501, 1, 0
        %v931 = vsel %vm502, 1, 0
        %v932 = vsel %vm503, 1, 0
        %v933 = vsel %vm504, 1, 0
        %v934 = vsel %vm505, 1, 0
        %v935 = vsel %vm506, 1, 0
        %v936 = vsel %vm507, 1, 0
        %v937 = vsel %vm508, 1, 0
        %v938 = vsel %vm509, 1, 0
        %v939 = vsel %vm510, 1, 0
        %v940 = vsel %vm511, 1, 0
        %v941 = vsel %vm512, 1, 0
        %v942 = vsel %vm513, 1, 0
        %v943 = vsel %vm514, 1, 0
        %v944 = vsel %vm515, 1, 0
        %vm945 = vcmp.eq.s32.totalorder %v929, 1
        %vm946 = vcmp.eq.s32.totalorder %v930, 1
        %vm947 = vcmp.eq.s32.totalorder %v931, 1
        %vm948 = vcmp.eq.s32.totalorder %v932, 1
        %vm949 = vcmp.eq.s32.totalorder %v933, 1
        %vm950 = vcmp.eq.s32.totalorder %v934, 1
        %vm951 = vcmp.eq.s32.totalorder %v935, 1
        %vm952 = vcmp.eq.s32.totalorder %v936, 1
        %vm953 = vcmp.eq.s32.totalorder %v937, 1
        %vm954 = vcmp.eq.s32.totalorder %v938, 1
        %vm955 = vcmp.eq.s32.totalorder %v939, 1
        %vm956 = vcmp.eq.s32.totalorder %v940, 1
        %vm957 = vcmp.eq.s32.totalorder %v941, 1
        %vm958 = vcmp.eq.s32.totalorder %v942, 1
        %vm959 = vcmp.eq.s32.totalorder %v943, 1
        %vm960 = vcmp.eq.s32.totalorder %v944, 1
        %v961 = vsel %vm945, %v928, 0.0
        %v962 = vsel %vm946, %v927, 0.0
        %v963 = vsel %vm947, %v926, 0.0
        %v964 = vsel %vm948, %v925, 0.0
        %v965 = vsel %vm949, %v924, 0.0
        %v966 = vsel %vm950, %v923, 0.0
        %v967 = vsel %vm951, %v922, 0.0
        %v968 = vsel %vm952, %v921, 0.0
        %v969 = vsel %vm953, %v920, 0.0
        %v970 = vsel %vm954, %v919, 0.0
        %v971 = vsel %vm955, %v918, 0.0
        %v972 = vsel %vm956, %v917, 0.0
        %v973 = vsel %vm957, %v916, 0.0
        %v974 = vsel %vm958, %v915, 0.0
        %v975 = vsel %vm959, %v914, 0.0
        %v976 = vsel %vm960, %v913, 0.0
        %v993 = vunpack.c.l.b16 %v557
        %v994 = vunpack.c.l.b16 %v558
        %v995 = vunpack.c.l.b16 %v559
        %v996 = vunpack.c.l.b16 %v560
        %v997 = vunpack.c.l.b16 %v561
        %v998 = vunpack.c.l.b16 %v562
        %v999 = vunpack.c.l.b16 %v563
        %v1000 = vunpack.c.l.b16 %v564
        %v1001 = vunpack.c.l.b16 %v565
        %v1002 = vunpack.c.l.b16 %v566
        %v1003 = vunpack.c.l.b16 %v567
        %v1004 = vunpack.c.l.b16 %v568
        %v1005 = vunpack.c.l.b16 %v569
        %v1006 = vunpack.c.l.b16 %v570
        %v1007 = vunpack.c.l.b16 %v571
        %v1008 = vunpack.c.l.b16 %v572
        %v1009 = vpack.c.b16 %v994, %v993
        %v1010 = vpack.c.b16 %v996, %v995
        %v1011 = vpack.c.b16 %v998, %v997
        %v1012 = vpack.c.b16 %v1000, %v999
        %v1013 = vpack.c.b16 %v1002, %v1001
        %v1014 = vpack.c.b16 %v1004, %v1003
        %v1015 = vpack.c.b16 %v1006, %v1005
        %v1016 = vpack.c.b16 %v1008, %v1007
        %1025 = vmatprep.subr.bf16.mxu0 0
        %1026 = vmatpush1.bf16.msra.mxu0 %v1009
        %1027 = vmatprep.subr.bf16.mxu0 0
        %1028 = vmatpush1.bf16.msra.mxu0 %v1010
        %1029 = vmatprep.subr.bf16.mxu0 0
        %1030 = vmatpush1.bf16.msra.mxu0 %v1011
        %1031 = vmatprep.subr.bf16.mxu0 0
        %1032 = vmatpush1.bf16.msra.mxu0 %v1012
        %1033 = vmatprep.subr.bf16.mxu0 0
        %1034 = vmatpush1.bf16.msra.mxu0 %v1013
        %1035 = vmatprep.subr.bf16.mxu0 0
        %1036 = vmatpush1.bf16.msra.mxu0 %v1014
        %1037 = vmatprep.subr.bf16.mxu0 0
        %1038 = vmatpush1.bf16.msra.mxu0 %v1015
        %1039 = vmatprep.subr.bf16.mxu0 0
        %1040 = vmatpush1.bf16.msra.mxu0 %v1016
        %1041 = vmatprep.subr.bf16.mxu0 0
        %1042 = vmatpush1.bf16.msra.mxu0 0
        %1043 = vmatprep.subr.bf16.mxu0 0
        %1044 = vmatpush1.bf16.msra.mxu0 0
        %1045 = vmatprep.subr.bf16.mxu0 0
        %1046 = vmatpush1.bf16.msra.mxu0 0
        %1047 = vmatprep.subr.bf16.mxu0 0
        %1048 = vmatpush1.bf16.msra.mxu0 0
        %1049 = vmatprep.subr.bf16.mxu0 0
        %1050 = vmatpush1.bf16.msra.mxu0 0
        %1051 = vmatprep.subr.bf16.mxu0 0
        %1052 = vmatpush1.bf16.msra.mxu0 0
        %1053 = vmatprep.subr.bf16.mxu0 0
        %1054 = vmatpush1.bf16.msra.mxu0 0
        %1055 = vmatprep.subr.bf16.mxu0 0
        %1056 = vmatpush1.bf16.msra.mxu0 0
        %1057 = vmatprep.mubr.bf16.mxu0 0
        %1058 = vmatmul.mubr.bf16.gmra.mrb[0].mxu0 %v548
        %v1059 = vpop.f32.mrb[0].mxu0
        %v1060 = vadd.f32 %v961, %v1059
        %v1061 = vpop.f32.mrb[0].mxu0
        %v1062 = vpop.f32.mrb[0].mxu0
        %v1063 = vadd.f32 %v962, %v1062
        %v1064 = vpop.f32.mrb[0].mxu0
        %1065 = vmatprep.mubr.bf16.mxu0 0
        %1066 = vmatmul.mubr.bf16.gmra.mrb[0].mxu0 %v549
        %v1067 = vpop.f32.mrb[0].mxu0
        %v1068 = vadd.f32 %v963, %v1067
        %v1069 = vpop.f32.mrb[0].mxu0
        %v1070 = vpop.f32.mrb[0].mxu0
        %v1071 = vadd.f32 %v964, %v1070
        %v1072 = vpop.f32.mrb[0].mxu0
        %1073 = vmatprep.mubr.bf16.mxu0 0
        %1074 = vmatmul.mubr.bf16.gmra.mrb[0].mxu0 %v550
        %v1075 = vpop.f32.mrb[0].mxu0
        %v1076 = vadd.f32 %v965, %v1075
        %v1077 = vpop.f32.mrb[0].mxu0
        %v1078 = vpop.f32.mrb[0].mxu0
        %v1079 = vadd.f32 %v966, %v1078
        %v1080 = vpop.f32.mrb[0].mxu0
        %1081 = vmatprep.mubr.bf16.mxu0 0
        %1082 = vmatmul.mubr.bf16.gmra.mrb[0].mxu0 %v551
        %v1083 = vpop.f32.mrb[0].mxu0
        %v1084 = vadd.f32 %v967, %v1083
        %v1085 = vpop.f32.mrb[0].mxu0
        %v1086 = vpop.f32.mrb[0].mxu0
        %v1087 = vadd.f32 %v968, %v1086
        %v1088 = vpop.f32.mrb[0].mxu0
        %1089 = vmatprep.mubr.bf16.mxu0 0
        %1090 = vmatmul.mubr.bf16.gmra.mrb[0].mxu0 %v552
        %v1091 = vpop.f32.mrb[0].mxu0
        %v1092 = vadd.f32 %v969, %v1091
        %v1093 = vpop.f32.mrb[0].mxu0
        %v1094 = vpop.f32.mrb[0].mxu0
        %v1095 = vadd.f32 %v970, %v1094
        %v1096 = vpop.f32.mrb[0].mxu0
        %1097 = vmatprep.mubr.bf16.mxu0 0
        %1098 = vmatmul.mubr.bf16.gmra.mrb[0].mxu0 %v553
        %v1099 = vpop.f32.mrb[0].mxu0
        %v1100 = vadd.f32 %v971, %v1099
        %v1101 = vpop.f32.mrb[0].mxu0
        %v1102 = vpop.f32.mrb[0].mxu0
        %v1103 = vadd.f32 %v972, %v1102
        %v1104 = vpop.f32.mrb[0].mxu0
        %1105 = vmatprep.mubr.bf16.mxu0 0
        %1106 = vmatmul.mubr.bf16.gmra.mrb[0].mxu0 %v554
        %v1107 = vpop.f32.mrb[0].mxu0
        %v1108 = vadd.f32 %v973, %v1107
        %v1109 = vpop.f32.mrb[0].mxu0
        %v1110 = vpop.f32.mrb[0].mxu0
        %v1111 = vadd.f32 %v974, %v1110
        %v1112 = vpop.f32.mrb[0].mxu0
        %1113 = vmatprep.mubr.bf16.mxu0 0
        %1114 = vmatmul.mubr.bf16.gmra.mrb[0].mxu0 %v555
        %v1115 = vpop.f32.mrb[0].mxu0
        %v1116 = vadd.f32 %v975, %v1115
        %v1117 = vpop.f32.mrb[0].mxu0
        %v1118 = vpop.f32.mrb[0].mxu0
        %v1119 = vadd.f32 %v976, %v1118
        %v1120 = vpop.f32.mrb[0].mxu0
        %1121 = vdwg.mxu0
        %v1122 = vrot.slane %v834, 1
        %v1123 = vrot.slane %v837, 1
        %v1124 = vrot.slane %v842, 1
        %v1125 = vrot.slane %v845, 1
        %v1126 = vrot.slane %v850, 1
        %v1127 = vrot.slane %v853, 1
        %v1128 = vrot.slane %v858, 1
        %v1129 = vrot.slane %v861, 1
        %v1130 = vrot.slane %v866, 1
        %v1131 = vrot.slane %v869, 1
        %v1132 = vrot.slane %v874, 1
        %v1133 = vrot.slane %v877, 1
        %v1134 = vrot.slane %v882, 1
        %v1135 = vrot.slane %v885, 1
        %v1136 = vrot.slane %v890, 1
        %v1137 = vrot.slane %v893, 1
        %vm1138 = vcmp.lt.s32.totalorder %v292, 7
        %v1139 = vsel %vm1138, %v1136, %v1137
        %v1140 = vsel %vm1138, %v1135, %v1136
        %v1141 = vsel %vm1138, %v1134, %v1135
        %v1142 = vsel %vm1138, %v1133, %v1134
        %v1143 = vsel %vm1138, %v1132, %v1133
        %v1144 = vsel %vm1138, %v1131, %v1132
        %v1145 = vsel %vm1138, %v1130, %v1131
        %v1146 = vsel %vm1138, %v1129, %v1130
        %v1147 = vsel %vm1138, %v1128, %v1129
        %v1148 = vsel %vm1138, %v1127, %v1128
        %v1149 = vsel %vm1138, %v1126, %v1127
        %v1150 = vsel %vm1138, %v1125, %v1126
        %v1151 = vsel %vm1138, %v1124, %v1125
        %v1152 = vsel %vm1138, %v1123, %v1124
        %v1153 = vsel %vm1138, %v1122, %v1123
        %v1154 = vsel %vm1138, %v1137, %v1122
        %v1155 = vsel %vm516, 1, 0
        %v1156 = vsel %vm517, 1, 0
        %v1157 = vsel %vm518, 1, 0
        %v1158 = vsel %vm519, 1, 0
        %v1159 = vsel %vm520, 1, 0
        %v1160 = vsel %vm521, 1, 0
        %v1161 = vsel %vm522, 1, 0
        %v1162 = vsel %vm523, 1, 0
        %v1163 = vsel %vm524, 1, 0
        %v1164 = vsel %vm525, 1, 0
        %v1165 = vsel %vm526, 1, 0
        %v1166 = vsel %vm527, 1, 0
        %v1167 = vsel %vm528, 1, 0
        %v1168 = vsel %vm529, 1, 0
        %v1169 = vsel %vm530, 1, 0
        %v1170 = vsel %vm531, 1, 0
        %vm1171 = vcmp.eq.s32.totalorder %v1155, 1
        %vm1172 = vcmp.eq.s32.totalorder %v1156, 1
        %vm1173 = vcmp.eq.s32.totalorder %v1157, 1
        %vm1174 = vcmp.eq.s32.totalorder %v1158, 1
        %vm1175 = vcmp.eq.s32.totalorder %v1159, 1
        %vm1176 = vcmp.eq.s32.totalorder %v1160, 1
        %vm1177 = vcmp.eq.s32.totalorder %v1161, 1
        %vm1178 = vcmp.eq.s32.totalorder %v1162, 1
        %vm1179 = vcmp.eq.s32.totalorder %v1163, 1
        %vm1180 = vcmp.eq.s32.totalorder %v1164, 1
        %vm1181 = vcmp.eq.s32.totalorder %v1165, 1
        %vm1182 = vcmp.eq.s32.totalorder %v1166, 1
        %vm1183 = vcmp.eq.s32.totalorder %v1167, 1
        %vm1184 = vcmp.eq.s32.totalorder %v1168, 1
        %vm1185 = vcmp.eq.s32.totalorder %v1169, 1
        %vm1186 = vcmp.eq.s32.totalorder %v1170, 1
        %v1187 = vsel %vm1171, %v1153, 0.0
        %v1188 = vsel %vm1172, %v1152, 0.0
        %v1189 = vsel %vm1173, %v1151, 0.0
        %v1190 = vsel %vm1174, %v1150, 0.0
        %v1191 = vsel %vm1175, %v1149, 0.0
        %v1192 = vsel %vm1176, %v1148, 0.0
        %v1193 = vsel %vm1177, %v1147, 0.0
        %v1194 = vsel %vm1178, %v1146, 0.0
        %v1195 = vsel %vm1179, %v1145, 0.0
        %v1196 = vsel %vm1180, %v1144, 0.0
        %v1197 = vsel %vm1181, %v1143, 0.0
        %v1198 = vsel %vm1182, %v1142, 0.0
        %v1199 = vsel %vm1183, %v1141, 0.0
        %v1200 = vsel %vm1184, %v1140, 0.0
        %v1201 = vsel %vm1185, %v1139, 0.0
        %v1202 = vsel %vm1186, %v1154, 0.0
        %v1203 = vadd.f32 %v1060, %v1187
        %v1204 = vadd.f32 %v1063, %v1188
        %v1205 = vadd.f32 %v1068, %v1189
        %v1206 = vadd.f32 %v1071, %v1190
        %v1207 = vadd.f32 %v1076, %v1191
        %v1208 = vadd.f32 %v1079, %v1192
        %v1209 = vadd.f32 %v1084, %v1193
        %v1210 = vadd.f32 %v1087, %v1194
        %v1211 = vadd.f32 %v1092, %v1195
        %v1212 = vadd.f32 %v1095, %v1196
        %v1213 = vadd.f32 %v1100, %v1197
        %v1214 = vadd.f32 %v1103, %v1198
        %v1215 = vadd.f32 %v1108, %v1199
        %v1216 = vadd.f32 %v1111, %v1200
        %v1217 = vadd.f32 %v1116, %v1201
        %v1218 = vadd.f32 %v1119, %v1202
        %v1219 = vld [vmem:[%s2] sm:$0x1]
        %v1221 = vlaneseq
        %v1222 = vshrl.u32 %v1221, 7
        %v1223 = vsub.s32 0, %v1222
        %v1224 = vrot.slane %v1219, %v1223
        %v1226 = vadd.f32 %v1203, %v1224
        %v1227 = vadd.f32 %v1204, %v1224
        %v1228 = vadd.f32 %v1205, %v1224
        %v1229 = vadd.f32 %v1206, %v1224
        %v1230 = vadd.f32 %v1207, %v1224
        %v1231 = vadd.f32 %v1208, %v1224
        %v1232 = vadd.f32 %v1209, %v1224
        %v1233 = vadd.f32 %v1210, %v1224
        %v1234 = vadd.f32 %v1211, %v1224
        %v1235 = vadd.f32 %v1212, %v1224
        %v1236 = vadd.f32 %v1213, %v1224
        %v1237 = vadd.f32 %v1214, %v1224
        %v1238 = vadd.f32 %v1215, %v1224
        %v1239 = vadd.f32 %v1216, %v1224
        %v1240 = vadd.f32 %v1217, %v1224
        %v1241 = vadd.f32 %v1218, %v1224
        %v1242 = vmax.f32 %v1226, 0.0
        %v1243 = vmax.f32 %v1227, 0.0
        %v1244 = vmax.f32 %v1228, 0.0
        %v1245 = vmax.f32 %v1229, 0.0
        %v1246 = vmax.f32 %v1230, 0.0
        %v1247 = vmax.f32 %v1231, 0.0
        %v1248 = vmax.f32 %v1232, 0.0
        %v1249 = vmax.f32 %v1233, 0.0
        %v1250 = vmax.f32 %v1234, 0.0
        %v1251 = vmax.f32 %v1235, 0.0
        %v1252 = vmax.f32 %v1236, 0.0
        %v1253 = vmax.f32 %v1237, 0.0
        %v1254 = vmax.f32 %v1238, 0.0
        %v1255 = vmax.f32 %v1239, 0.0
        %v1256 = vmax.f32 %v1240, 0.0
        %v1257 = vmax.f32 %v1241, 0.0
        %v1258 = vpack.c.bf16 %v1243, %v1242
        %v1259 = vpack.c.bf16 %v1245, %v1244
        %v1260 = vpack.c.bf16 %v1247, %v1246
        %v1261 = vpack.c.bf16 %v1249, %v1248
        %v1262 = vpack.c.bf16 %v1251, %v1250
        %v1263 = vpack.c.bf16 %v1253, %v1252
        %v1264 = vpack.c.bf16 %v1255, %v1254
        %v1265 = vpack.c.bf16 %v1257, %v1256
        %s1266 = scalar_lea.vmem [#allocation7], 64
        %v1267 = vld [vmem:[%s1266] sm:$0xf]
        %v1268 = vld [vmem:[%s1266 + $0x4] sm:$0xf]
        %v1269 = vld [vmem:[%s1266 + $0x8] sm:$0xf]
        %v1270 = vld [vmem:[%s1266 + $0xc] sm:$0xf]
        %v1271 = vld [vmem:[%s1266 + $0x10] sm:$0xf]
        %v1272 = vld [vmem:[%s1266 + $0x14] sm:$0xf]
        %v1273 = vld [vmem:[%s1266 + $0x18] sm:$0xf]
        %v1274 = vld [vmem:[%s1266 + $0x1c] sm:$0xf]
        %v1275 = vld [vmem:[%s1266 + $0x20] sm:$0xf]
        %v1276 = vld [vmem:[%s1266 + $0x24] sm:$0xf]
        %v1277 = vld [vmem:[%s1266 + $0x28] sm:$0xf]
        %v1278 = vld [vmem:[%s1266 + $0x2c] sm:$0xf]
        %v1279 = vld [vmem:[%s1266 + $0x30] sm:$0xf]
        %v1280 = vld [vmem:[%s1266 + $0x34] sm:$0xf]
        %v1281 = vld [vmem:[%s1266 + $0x38] sm:$0xf]
        %v1282 = vld [vmem:[%s1266 + $0x3c] sm:$0xf]
        %v1283 = vld [vmem:[#allocation7] sm:$0xf]
        %v1284 = vld [vmem:[#allocation7 + $0x4] sm:$0xf]
        %v1285 = vld [vmem:[#allocation7 + $0x8] sm:$0xf]
        %v1286 = vld [vmem:[#allocation7 + $0xc] sm:$0xf]
        %v1287 = vld [vmem:[#allocation7 + $0x10] sm:$0xf]
        %v1288 = vld [vmem:[#allocation7 + $0x14] sm:$0xf]
        %v1289 = vld [vmem:[#allocation7 + $0x18] sm:$0xf]
        %v1290 = vld [vmem:[#allocation7 + $0x1c] sm:$0xf]
        %v1291 = vld [vmem:[#allocation7 + $0x20] sm:$0xf]
        %v1292 = vld [vmem:[#allocation7 + $0x24] sm:$0xf]
        %v1293 = vld [vmem:[#allocation7 + $0x28] sm:$0xf]
        %v1294 = vld [vmem:[#allocation7 + $0x2c] sm:$0xf]
        %v1295 = vld [vmem:[#allocation7 + $0x30] sm:$0xf]
        %v1296 = vld [vmem:[#allocation7 + $0x34] sm:$0xf]
        %v1297 = vld [vmem:[#allocation7 + $0x38] sm:$0xf]
        %v1298 = vld [vmem:[#allocation7 + $0x3c] sm:$0xf]
        %v1315 = vunpack.c.l.b16 %v1283
        %v1316 = vunpack.c.l.b16 %v1284
        %v1317 = vunpack.c.l.b16 %v1285
        %v1318 = vunpack.c.l.b16 %v1286
        %v1319 = vunpack.c.l.b16 %v1287
        %v1320 = vunpack.c.l.b16 %v1288
        %v1321 = vunpack.c.l.b16 %v1289
        %v1322 = vunpack.c.l.b16 %v1290
        %v1323 = vunpack.c.l.b16 %v1291
        %v1324 = vunpack.c.l.b16 %v1292
        %v1325 = vunpack.c.l.b16 %v1293
        %v1326 = vunpack.c.l.b16 %v1294
        %v1327 = vunpack.c.l.b16 %v1295
        %v1328 = vunpack.c.l.b16 %v1296
        %v1329 = vunpack.c.l.b16 %v1297
        %v1330 = vunpack.c.l.b16 %v1298
        %v1331 = vpack.c.b16 %v1316, %v1315
        %v1332 = vpack.c.b16 %v1318, %v1317
        %v1333 = vpack.c.b16 %v1320, %v1319
        %v1334 = vpack.c.b16 %v1322, %v1321
        %v1335 = vpack.c.b16 %v1324, %v1323
        %v1336 = vpack.c.b16 %v1326, %v1325
        %v1337 = vpack.c.b16 %v1328, %v1327
        %v1338 = vpack.c.b16 %v1330, %v1329
        %1347 = vmatprep.subr.bf16.mxu0 0
        %1348 = vmatpush1.bf16.msra.mxu0 %v1331
        %1349 = vmatprep.subr.bf16.mxu0 0
        %1350 = vmatpush1.bf16.msra.mxu0 %v1332
        %1351 = vmatprep.subr.bf16.mxu0 0
        %1352 = vmatpush1.bf16.msra.mxu0 %v1333
        %1353 = vmatprep.subr.bf16.mxu0 0
        %1354 = vmatpush1.bf16.msra.mxu0 %v1334
        %1355 = vmatprep.subr.bf16.mxu0 0
        %1356 = vmatpush1.bf16.msra.mxu0 %v1335
        %1357 = vmatprep.subr.bf16.mxu0 0
        %1358 = vmatpush1.bf16.msra.mxu0 %v1336
        %1359 = vmatprep.subr.bf16.mxu0 0
        %1360 = vmatpush1.bf16.msra.mxu0 %v1337
        %1361 = vmatprep.subr.bf16.mxu0 0
        %1362 = vmatpush1.bf16.msra.mxu0 %v1338
        %1363 = vmatprep.subr.bf16.mxu0 0
        %1364 = vmatpush1.bf16.msra.mxu0 0
        %1365 = vmatprep.subr.bf16.mxu0 0
        %1366 = vmatpush1.bf16.msra.mxu0 0
        %1367 = vmatprep.subr.bf16.mxu0 0
        %1368 = vmatpush1.bf16.msra.mxu0 0
        %1369 = vmatprep.subr.bf16.mxu0 0
        %1370 = vmatpush1.bf16.msra.mxu0 0
        %1371 = vmatprep.subr.bf16.mxu0 0
        %1372 = vmatpush1.bf16.msra.mxu0 0
        %1373 = vmatprep.subr.bf16.mxu0 0
        %1374 = vmatpush1.bf16.msra.mxu0 0
        %1375 = vmatprep.subr.bf16.mxu0 0
        %1376 = vmatpush1.bf16.msra.mxu0 0
        %1377 = vmatprep.subr.bf16.mxu0 0
        %1378 = vmatpush1.bf16.msra.mxu0 0
        %1379 = vmatprep.mubr.bf16.mxu0 0
        %1380 = vmatmul.mubr.bf16.gmra.mrb[0].mxu0 %v1258
        %v1381 = vpop.f32.mrb[0].mxu0
        %v1382 = vadd.f32 0.0, %v1381
        %v1383 = vpop.f32.mrb[0].mxu0
        %v1384 = vpop.f32.mrb[0].mxu0
        %v1385 = vadd.f32 0.0, %v1384
        %v1386 = vpop.f32.mrb[0].mxu0
        %1387 = vmatprep.mubr.bf16.mxu0 0
        %1388 = vmatmul.mubr.bf16.gmra.mrb[0].mxu0 %v1259
        %v1389 = vpop.f32.mrb[0].mxu0
        %v1390 = vadd.f32 0.0, %v1389
        %v1391 = vpop.f32.mrb[0].mxu0
        %v1392 = vpop.f32.mrb[0].mxu0
        %v1393 = vadd.f32 0.0, %v1392
        %v1394 = vpop.f32.mrb[0].mxu0
        %1395 = vmatprep.mubr.bf16.mxu0 0
        %1396 = vmatmul.mubr.bf16.gmra.mrb[0].mxu0 %v1260
        %v1397 = vpop.f32.mrb[0].mxu0
        %v1398 = vadd.f32 0.0, %v1397
        %v1399 = vpop.f32.mrb[0].mxu0
        %v1400 = vpop.f32.mrb[0].mxu0
        %v1401 = vadd.f32 0.0, %v1400
        %v1402 = vpop.f32.mrb[0].mxu0
        %1403 = vmatprep.mubr.bf16.mxu0 0
        %1404 = vmatmul.mubr.bf16.gmra.mrb[0].mxu0 %v1261
        %v1405 = vpop.f32.mrb[0].mxu0
        %v1406 = vadd.f32 0.0, %v1405
        %v1407 = vpop.f32.mrb[0].mxu0
        %v1408 = vpop.f32.mrb[0].mxu0
        %v1409 = vadd.f32 0.0, %v1408
        %v1410 = vpop.f32.mrb[0].mxu0
        %1411 = vmatprep.mubr.bf16.mxu0 0
        %1412 = vmatmul.mubr.bf16.gmra.mrb[0].mxu0 %v1262
        %v1413 = vpop.f32.mrb[0].mxu0
        %v1414 = vadd.f32 0.0, %v1413
        %v1415 = vpop.f32.mrb[0].mxu0
        %v1416 = vpop.f32.mrb[0].mxu0
        %v1417 = vadd.f32 0.0, %v1416
        %v1418 = vpop.f32.mrb[0].mxu0
        %1419 = vmatprep.mubr.bf16.mxu0 0
        %1420 = vmatmul.mubr.bf16.gmra.mrb[0].mxu0 %v1263
        %v1421 = vpop.f32.mrb[0].mxu0
        %v1422 = vadd.f32 0.0, %v1421
        %v1423 = vpop.f32.mrb[0].mxu0
        %v1424 = vpop.f32.mrb[0].mxu0
        %v1425 = vadd.f32 0.0, %v1424
        %v1426 = vpop.f32.mrb[0].mxu0
        %1427 = vmatprep.mubr.bf16.mxu0 0
        %1428 = vmatmul.mubr.bf16.gmra.mrb[0].mxu0 %v1264
        %v1429 = vpop.f32.mrb[0].mxu0
        %v1430 = vadd.f32 0.0, %v1429
        %v1431 = vpop.f32.mrb[0].mxu0
        %v1432 = vpop.f32.mrb[0].mxu0
        %v1433 = vadd.f32 0.0, %v1432
        %v1434 = vpop.f32.mrb[0].mxu0
        %1435 = vmatprep.mubr.bf16.mxu0 0
        %1436 = vmatmul.mubr.bf16.gmra.mrb[0].mxu0 %v1265
        %v1437 = vpop.f32.mrb[0].mxu0
        %v1438 = vadd.f32 0.0, %v1437
        %v1439 = vpop.f32.mrb[0].mxu0
        %v1440 = vpop.f32.mrb[0].mxu0
        %v1441 = vadd.f32 0.0, %v1440
        %v1442 = vpop.f32.mrb[0].mxu0
        %1443 = vdwg.mxu0
        %s1444 = scalar_lea.vmem [#allocation7], 128
        %v1445 = vld [vmem:[%s1444] sm:$0xf]
        %v1446 = vld [vmem:[%s1444 + $0x4] sm:$0xf]
        %v1447 = vld [vmem:[%s1444 + $0x8] sm:$0xf]
        %v1448 = vld [vmem:[%s1444 + $0xc] sm:$0xf]
        %v1449 = vld [vmem:[%s1444 + $0x10] sm:$0xf]
        %v1450 = vld [vmem:[%s1444 + $0x14] sm:$0xf]
        %v1451 = vld [vmem:[%s1444 + $0x18] sm:$0xf]
        %v1452 = vld [vmem:[%s1444 + $0x1c] sm:$0xf]
        %v1453 = vld [vmem:[%s1444 + $0x20] sm:$0xf]
        %v1454 = vld [vmem:[%s1444 + $0x24] sm:$0xf]
        %v1455 = vld [vmem:[%s1444 + $0x28] sm:$0xf]
        %v1456 = vld [vmem:[%s1444 + $0x2c] sm:$0xf]
        %v1457 = vld [vmem:[%s1444 + $0x30] sm:$0xf]
        %v1458 = vld [vmem:[%s1444 + $0x34] sm:$0xf]
        %v1459 = vld [vmem:[%s1444 + $0x38] sm:$0xf]
        %v1460 = vld [vmem:[%s1444 + $0x3c] sm:$0xf]
        %v1477 = vunpack.c.l.b16 %v1445
        %v1478 = vunpack.c.l.b16 %v1446
        %v1479 = vunpack.c.l.b16 %v1447
        %v1480 = vunpack.c.l.b16 %v1448
        %v1481 = vunpack.c.l.b16 %v1449
        %v1482 = vunpack.c.l.b16 %v1450
        %v1483 = vunpack.c.l.b16 %v1451
        %v1484 = vunpack.c.l.b16 %v1452
        %v1485 = vunpack.c.l.b16 %v1453
        %v1486 = vunpack.c.l.b16 %v1454
        %v1487 = vunpack.c.l.b16 %v1455
        %v1488 = vunpack.c.l.b16 %v1456
        %v1489 = vunpack.c.l.b16 %v1457
        %v1490 = vunpack.c.l.b16 %v1458
        %v1491 = vunpack.c.l.b16 %v1459
        %v1492 = vunpack.c.l.b16 %v1460
        %v1493 = vpack.c.b16 %v1478, %v1477
        %v1494 = vpack.c.b16 %v1480, %v1479
        %v1495 = vpack.c.b16 %v1482, %v1481
        %v1496 = vpack.c.b16 %v1484, %v1483
        %v1497 = vpack.c.b16 %v1486, %v1485
        %v1498 = vpack.c.b16 %v1488, %v1487
        %v1499 = vpack.c.b16 %v1490, %v1489
        %v1500 = vpack.c.b16 %v1492, %v1491
        %1509 = vmatprep.subr.bf16.mxu0 0
        %1510 = vmatpush1.bf16.msra.mxu0 %v1493
        %1511 = vmatprep.subr.bf16.mxu0 0
        %1512 = vmatpush1.bf16.msra.mxu0 %v1494
        %1513 = vmatprep.subr.bf16.mxu0 0
        %1514 = vmatpush1.bf16.msra.mxu0 %v1495
        %1515 = vmatprep.subr.bf16.mxu0 0
        %1516 = vmatpush1.bf16.msra.mxu0 %v1496
        %1517 = vmatprep.subr.bf16.mxu0 0
        %1518 = vmatpush1.bf16.msra.mxu0 %v1497
        %1519 = vmatprep.subr.bf16.mxu0 0
        %1520 = vmatpush1.bf16.msra.mxu0 %v1498
        %1521 = vmatprep.subr.bf16.mxu0 0
        %1522 = vmatpush1.bf16.msra.mxu0 %v1499
        %1523 = vmatprep.subr.bf16.mxu0 0
        %1524 = vmatpush1.bf16.msra.mxu0 %v1500
        %1525 = vmatprep.subr.bf16.mxu0 0
        %1526 = vmatpush1.bf16.msra.mxu0 0
        %1527 = vmatprep.subr.bf16.mxu0 0
        %1528 = vmatpush1.bf16.msra.mxu0 0
        %1529 = vmatprep.subr.bf16.mxu0 0
        %1530 = vmatpush1.bf16.msra.mxu0 0
        %1531 = vmatprep.subr.bf16.mxu0 0
        %1532 = vmatpush1.bf16.msra.mxu0 0
        %1533 = vmatprep.subr.bf16.mxu0 0
        %1534 = vmatpush1.bf16.msra.mxu0 0
        %1535 = vmatprep.subr.bf16.mxu0 0
        %1536 = vmatpush1.bf16.msra.mxu0 0
        %1537 = vmatprep.subr.bf16.mxu0 0
        %1538 = vmatpush1.bf16.msra.mxu0 0
        %1539 = vmatprep.subr.bf16.mxu0 0
        %1540 = vmatpush1.bf16.msra.mxu0 0
        %1541 = vmatprep.mubr.bf16.mxu0 0
        %1542 = vmatmul.mubr.bf16.gmra.mrb[0].mxu0 %v1258
        %v1543 = vpop.f32.mrb[0].mxu0
        %v1544 = vadd.f32 0.0, %v1543
        %v1545 = vpop.f32.mrb[0].mxu0
        %v1546 = vpop.f32.mrb[0].mxu0
        %v1547 = vadd.f32 0.0, %v1546
        %v1548 = vpop.f32.mrb[0].mxu0
        %1549 = vmatprep.mubr.bf16.mxu0 0
        %1550 = vmatmul.mubr.bf16.gmra.mrb[0].mxu0 %v1259
        %v1551 = vpop.f32.mrb[0].mxu0
        %v1552 = vadd.f32 0.0, %v1551
        %v1553 = vpop.f32.mrb[0].mxu0
        %v1554 = vpop.f32.mrb[0].mxu0
        %v1555 = vadd.f32 0.0, %v1554
        %v1556 = vpop.f32.mrb[0].mxu0
        %1557 = vmatprep.mubr.bf16.mxu0 0
        %1558 = vmatmul.mubr.bf16.gmra.mrb[0].mxu0 %v1260
        %v1559 = vpop.f32.mrb[0].mxu0
        %v1560 = vadd.f32 0.0, %v1559
        %v1561 = vpop.f32.mrb[0].mxu0
        %v1562 = vpop.f32.mrb[0].mxu0
        %v1563 = vadd.f32 0.0, %v1562
        %v1564 = vpop.f32.mrb[0].mxu0
        %1565 = vmatprep.mubr.bf16.mxu0 0
        %1566 = vmatmul.mubr.bf16.gmra.mrb[0].mxu0 %v1261
        %v1567 = vpop.f32.mrb[0].mxu0
        %v1568 = vadd.f32 0.0, %v1567
        %v1569 = vpop.f32.mrb[0].mxu0
        %v1570 = vpop.f32.mrb[0].mxu0
        %v1571 = vadd.f32 0.0, %v1570
        %v1572 = vpop.f32.mrb[0].mxu0
        %1573 = vmatprep.mubr.bf16.mxu0 0
        %1574 = vmatmul.mubr.bf16.gmra.mrb[0].mxu0 %v1262
        %v1575 = vpop.f32.mrb[0].mxu0
        %v1576 = vadd.f32 0.0, %v1575
        %v1577 = vpop.f32.mrb[0].mxu0
        %v1578 = vpop.f32.mrb[0].mxu0
        %v1579 = vadd.f32 0.0, %v1578
        %v1580 = vpop.f32.mrb[0].mxu0
        %1581 = vmatprep.mubr.bf16.mxu0 0
        %1582 = vmatmul.mubr.bf16.gmra.mrb[0].mxu0 %v1263
        %v1583 = vpop.f32.mrb[0].mxu0
        %v1584 = vadd.f32 0.0, %v1583
        %v1585 = vpop.f32.mrb[0].mxu0
        %v1586 = vpop.f32.mrb[0].mxu0
        %v1587 = vadd.f32 0.0, %v1586
        %v1588 = vpop.f32.mrb[0].mxu0
        %1589 = vmatprep.mubr.bf16.mxu0 0
        %1590 = vmatmul.mubr.bf16.gmra.mrb[0].mxu0 %v1264
        %v1591 = vpop.f32.mrb[0].mxu0
        %v1592 = vadd.f32 0.0, %v1591
        %v1593 = vpop.f32.mrb[0].mxu0
        %v1594 = vpop.f32.mrb[0].mxu0
        %v1595 = vadd.f32 0.0, %v1594
        %v1596 = vpop.f32.mrb[0].mxu0
        %1597 = vmatprep.mubr.bf16.mxu0 0
        %1598 = vmatmul.mubr.bf16.gmra.mrb[0].mxu0 %v1265
        %v1599 = vpop.f32.mrb[0].mxu0
        %v1600 = vadd.f32 0.0, %v1599
        %v1601 = vpop.f32.mrb[0].mxu0
        %v1602 = vpop.f32.mrb[0].mxu0
        %v1603 = vadd.f32 0.0, %v1602
        %v1604 = vpop.f32.mrb[0].mxu0
        %1605 = vdwg.mxu0
        %v1606 = vrot.slane %v1382, 7
        %v1607 = vrot.slane %v1385, 7
        %v1608 = vrot.slane %v1390, 7
        %v1609 = vrot.slane %v1393, 7
        %v1610 = vrot.slane %v1398, 7
        %v1611 = vrot.slane %v1401, 7
        %v1612 = vrot.slane %v1406, 7
        %v1613 = vrot.slane %v1409, 7
        %v1614 = vrot.slane %v1414, 7
        %v1615 = vrot.slane %v1417, 7
        %v1616 = vrot.slane %v1422, 7
        %v1617 = vrot.slane %v1425, 7
        %v1618 = vrot.slane %v1430, 7
        %v1619 = vrot.slane %v1433, 7
        %v1620 = vrot.slane %v1438, 7
        %v1621 = vrot.slane %v1441, 7
        %v1622 = vsel %vm912, %v1620, %v1621
        %v1623 = vsel %vm912, %v1619, %v1620
        %v1624 = vsel %vm912, %v1618, %v1619
        %v1625 = vsel %vm912, %v1617, %v1618
        %v1626 = vsel %vm912, %v1616, %v1617
        %v1627 = vsel %vm912, %v1615, %v1616
        %v1628 = vsel %vm912, %v1614, %v1615
        %v1629 = vsel %vm912, %v1613, %v1614
        %v1630 = vsel %vm912, %v1612, %v1613
        %v1631 = vsel %vm912, %v1611, %v1612
        %v1632 = vsel %vm912, %v1610, %v1611
        %v1633 = vsel %vm912, %v1609, %v1610
        %v1634 = vsel %vm912, %v1608, %v1609
        %v1635 = vsel %vm912, %v1607, %v1608
        %v1636 = vsel %vm912, %v1606, %v1607
        %v1637 = vsel %vm912, %v1621, %v1606
        %v1638 = vsel %vm945, %v1637, 0.0
        %v1639 = vsel %vm946, %v1636, 0.0
        %v1640 = vsel %vm947, %v1635, 0.0
        %v1641 = vsel %vm948, %v1634, 0.0
        %v1642 = vsel %vm949, %v1633, 0.0
        %v1643 = vsel %vm950, %v1632, 0.0
        %v1644 = vsel %vm951, %v1631, 0.0
        %v1645 = vsel %vm952, %v1630, 0.0
        %v1646 = vsel %vm953, %v1629, 0.0
        %v1647 = vsel %vm954, %v1628, 0.0
        %v1648 = vsel %vm955, %v1627, 0.0
        %v1649 = vsel %vm956, %v1626, 0.0
        %v1650 = vsel %vm957, %v1625, 0.0
        %v1651 = vsel %vm958, %v1624, 0.0
        %v1652 = vsel %vm959, %v1623, 0.0
        %v1653 = vsel %vm960, %v1622, 0.0
        %v1670 = vunpack.c.l.b16 %v1267
        %v1671 = vunpack.c.l.b16 %v1268
        %v1672 = vunpack.c.l.b16 %v1269
        %v1673 = vunpack.c.l.b16 %v1270
        %v1674 = vunpack.c.l.b16 %v1271
        %v1675 = vunpack.c.l.b16 %v1272
        %v1676 = vunpack.c.l.b16 %v1273
        %v1677 = vunpack.c.l.b16 %v1274
        %v1678 = vunpack.c.l.b16 %v1275
        %v1679 = vunpack.c.l.b16 %v1276
        %v1680 = vunpack.c.l.b16 %v1277
        %v1681 = vunpack.c.l.b16 %v1278
        %v1682 = vunpack.c.l.b16 %v1279
        %v1683 = vunpack.c.l.b16 %v1280
        %v1684 = vunpack.c.l.b16 %v1281
        %v1685 = vunpack.c.l.b16 %v1282
        %v1686 = vpack.c.b16 %v1671, %v1670
        %v1687 = vpack.c.b16 %v1673, %v1672
        %v1688 = vpack.c.b16 %v1675, %v1674
        %v1689 = vpack.c.b16 %v1677, %v1676
        %v1690 = vpack.c.b16 %v1679, %v1678
        %v1691 = vpack.c.b16 %v1681, %v1680
        %v1692 = vpack.c.b16 %v1683, %v1682
        %v1693 = vpack.c.b16 %v1685, %v1684
        %1702 = vmatprep.subr.bf16.mxu0 0
        %1703 = vmatpush1.bf16.msra.mxu0 %v1686
        %1704 = vmatprep.subr.bf16.mxu0 0
        %1705 = vmatpush1.bf16.msra.mxu0 %v1687
        %1706 = vmatprep.subr.bf16.mxu0 0
        %1707 = vmatpush1.bf16.msra.mxu0 %v1688
        %1708 = vmatprep.subr.bf16.mxu0 0
        %1709 = vmatpush1.bf16.msra.mxu0 %v1689
        %1710 = vmatprep.subr.bf16.mxu0 0
        %1711 = vmatpush1.bf16.msra.mxu0 %v1690
        %1712 = vmatprep.subr.bf16.mxu0 0
        %1713 = vmatpush1.bf16.msra.mxu0 %v1691
        %1714 = vmatprep.subr.bf16.mxu0 0
        %1715 = vmatpush1.bf16.msra.mxu0 %v1692
        %1716 = vmatprep.subr.bf16.mxu0 0
        %1717 = vmatpush1.bf16.msra.mxu0 %v1693
        %1718 = vmatprep.subr.bf16.mxu0 0
        %1719 = vmatpush1.bf16.msra.mxu0 0
        %1720 = vmatprep.subr.bf16.mxu0 0
        %1721 = vmatpush1.bf16.msra.mxu0 0
        %1722 = vmatprep.subr.bf16.mxu0 0
        %1723 = vmatpush1.bf16.msra.mxu0 0
        %1724 = vmatprep.subr.bf16.mxu0 0
        %1725 = vmatpush1.bf16.msra.mxu0 0
        %1726 = vmatprep.subr.bf16.mxu0 0
        %1727 = vmatpush1.bf16.msra.mxu0 0
        %1728 = vmatprep.subr.bf16.mxu0 0
        %1729 = vmatpush1.bf16.msra.mxu0 0
        %1730 = vmatprep.subr.bf16.mxu0 0
        %1731 = vmatpush1.bf16.msra.mxu0 0
        %1732 = vmatprep.subr.bf16.mxu0 0
        %1733 = vmatpush1.bf16.msra.mxu0 0
        %1734 = vmatprep.mubr.bf16.mxu0 0
        %1735 = vmatmul.mubr.bf16.gmra.mrb[0].mxu0 %v1258
        %v1736 = vpop.f32.mrb[0].mxu0
        %v1737 = vadd.f32 %v1638, %v1736
        %v1738 = vpop.f32.mrb[0].mxu0
        %v1739 = vpop.f32.mrb[0].mxu0
        %v1740 = vadd.f32 %v1639, %v1739
        %v1741 = vpop.f32.mrb[0].mxu0
        %1742 = vmatprep.mubr.bf16.mxu0 0
        %1743 = vmatmul.mubr.bf16.gmra.mrb[0].mxu0 %v1259
        %v1744 = vpop.f32.mrb[0].mxu0
        %v1745 = vadd.f32 %v1640, %v1744
        %v1746 = vpop.f32.mrb[0].mxu0
        %v1747 = vpop.f32.mrb[0].mxu0
        %v1748 = vadd.f32 %v1641, %v1747
        %v1749 = vpop.f32.mrb[0].mxu0
        %1750 = vmatprep.mubr.bf16.mxu0 0
        %1751 = vmatmul.mubr.bf16.gmra.mrb[0].mxu0 %v1260
        %v1752 = vpop.f32.mrb[0].mxu0
        %v1753 = vadd.f32 %v1642, %v1752
        %v1754 = vpop.f32.mrb[0].mxu0
        %v1755 = vpop.f32.mrb[0].mxu0
        %v1756 = vadd.f32 %v1643, %v1755
        %v1757 = vpop.f32.mrb[0].mxu0
        %1758 = vmatprep.mubr.bf16.mxu0 0
        %1759 = vmatmul.mubr.bf16.gmra.mrb[0].mxu0 %v1261
        %v1760 = vpop.f32.mrb[0].mxu0
        %v1761 = vadd.f32 %v1644, %v1760
        %v1762 = vpop.f32.mrb[0].mxu0
        %v1763 = vpop.f32.mrb[0].mxu0
        %v1764 = vadd.f32 %v1645, %v1763
        %v1765 = vpop.f32.mrb[0].mxu0
        %1766 = vmatprep.mubr.bf16.mxu0 0
        %1767 = vmatmul.mubr.bf16.gmra.mrb[0].mxu0 %v1262
        %v1768 = vpop.f32.mrb[0].mxu0
        %v1769 = vadd.f32 %v1646, %v1768
        %v1770 = vpop.f32.mrb[0].mxu0
        %v1771 = vpop.f32.mrb[0].mxu0
        %v1772 = vadd.f32 %v1647, %v1771
        %v1773 = vpop.f32.mrb[0].mxu0
        %1774 = vmatprep.mubr.bf16.mxu0 0
        %1775 = vmatmul.mubr.bf16.gmra.mrb[0].mxu0 %v1263
        %v1776 = vpop.f32.mrb[0].mxu0
        %v1777 = vadd.f32 %v1648, %v1776
        %v1778 = vpop.f32.mrb[0].mxu0
        %v1779 = vpop.f32.mrb[0].mxu0
        %v1780 = vadd.f32 %v1649, %v1779
        %v1781 = vpop.f32.mrb[0].mxu0
        %1782 = vmatprep.mubr.bf16.mxu0 0
        %1783 = vmatmul.mubr.bf16.gmra.mrb[0].mxu0 %v1264
        %v1784 = vpop.f32.mrb[0].mxu0
        %v1785 = vadd.f32 %v1650, %v1784
        %v1786 = vpop.f32.mrb[0].mxu0
        %v1787 = vpop.f32.mrb[0].mxu0
        %v1788 = vadd.f32 %v1651, %v1787
        %v1789 = vpop.f32.mrb[0].mxu0
        %1790 = vmatprep.mubr.bf16.mxu0 0
        %1791 = vmatmul.mubr.bf16.gmra.mrb[0].mxu0 %v1265
        %v1792 = vpop.f32.mrb[0].mxu0
        %v1793 = vadd.f32 %v1652, %v1792
        %v1794 = vpop.f32.mrb[0].mxu0
        %v1795 = vpop.f32.mrb[0].mxu0
        %v1796 = vadd.f32 %v1653, %v1795
        %v1797 = vpop.f32.mrb[0].mxu0
        %1798 = vdwg.mxu0
        %v1799 = vrot.slane %v1544, 1
        %v1800 = vrot.slane %v1547, 1
        %v1801 = vrot.slane %v1552, 1
        %v1802 = vrot.slane %v1555, 1
        %v1803 = vrot.slane %v1560, 1
        %v1804 = vrot.slane %v1563, 1
        %v1805 = vrot.slane %v1568, 1
        %v1806 = vrot.slane %v1571, 1
        %v1807 = vrot.slane %v1576, 1
        %v1808 = vrot.slane %v1579, 1
        %v1809 = vrot.slane %v1584, 1
        %v1810 = vrot.slane %v1587, 1
        %v1811 = vrot.slane %v1592, 1
        %v1812 = vrot.slane %v1595, 1
        %v1813 = vrot.slane %v1600, 1
        %v1814 = vrot.slane %v1603, 1
        %v1815 = vsel %vm1138, %v1813, %v1814
        %v1816 = vsel %vm1138, %v1812, %v1813
        %v1817 = vsel %vm1138, %v1811, %v1812
        %v1818 = vsel %vm1138, %v1810, %v1811
        %v1819 = vsel %vm1138, %v1809, %v1810
        %v1820 = vsel %vm1138, %v1808, %v1809
        %v1821 = vsel %vm1138, %v1807, %v1808
        %v1822 = vsel %vm1138, %v1806, %v1807
        %v1823 = vsel %vm1138, %v1805, %v1806
        %v1824 = vsel %vm1138, %v1804, %v1805
        %v1825 = vsel %vm1138, %v1803, %v1804
        %v1826 = vsel %vm1138, %v1802, %v1803
        %v1827 = vsel %vm1138, %v1801, %v1802
        %v1828 = vsel %vm1138, %v1800, %v1801
        %v1829 = vsel %vm1138, %v1799, %v1800
        %v1830 = vsel %vm1138, %v1814, %v1799
        %v1831 = vsel %vm1171, %v1829, 0.0
        %v1832 = vsel %vm1172, %v1828, 0.0
        %v1833 = vsel %vm1173, %v1827, 0.0
        %v1834 = vsel %vm1174, %v1826, 0.0
        %v1835 = vsel %vm1175, %v1825, 0.0
        %v1836 = vsel %vm1176, %v1824, 0.0
        %v1837 = vsel %vm1177, %v1823, 0.0
        %v1838 = vsel %vm1178, %v1822, 0.0
        %v1839 = vsel %vm1179, %v1821, 0.0
        %v1840 = vsel %vm1180, %v1820, 0.0
        %v1841 = vsel %vm1181, %v1819, 0.0
        %v1842 = vsel %vm1182, %v1818, 0.0
        %v1843 = vsel %vm1183, %v1817, 0.0
        %v1844 = vsel %vm1184, %v1816, 0.0
        %v1845 = vsel %vm1185, %v1815, 0.0
        %v1846 = vsel %vm1186, %v1830, 0.0
        %v1847 = vadd.f32 %v1737, %v1831
        %v1848 = vadd.f32 %v1740, %v1832
        %v1849 = vadd.f32 %v1745, %v1833
        %v1850 = vadd.f32 %v1748, %v1834
        %v1851 = vadd.f32 %v1753, %v1835
        %v1852 = vadd.f32 %v1756, %v1836
        %v1853 = vadd.f32 %v1761, %v1837
        %v1854 = vadd.f32 %v1764, %v1838
        %v1855 = vadd.f32 %v1769, %v1839
        %v1856 = vadd.f32 %v1772, %v1840
        %v1857 = vadd.f32 %v1777, %v1841
        %v1858 = vadd.f32 %v1780, %v1842
        %v1859 = vadd.f32 %v1785, %v1843
        %v1860 = vadd.f32 %v1788, %v1844
        %v1861 = vadd.f32 %v1793, %v1845
        %v1862 = vadd.f32 %v1796, %v1846
        %v1863 = vld [vmem:[%s4] sm:$0x1]
        %v1865 = vlaneseq
        %v1866 = vshrl.u32 %v1865, 7
        %v1867 = vsub.s32 0, %v1866
        %v1868 = vrot.slane %v1863, %v1867
        %v1870 = vadd.f32 %v1847, %v1868
        %v1871 = vadd.f32 %v1848, %v1868
        %v1872 = vadd.f32 %v1849, %v1868
        %v1873 = vadd.f32 %v1850, %v1868
        %v1874 = vadd.f32 %v1851, %v1868
        %v1875 = vadd.f32 %v1852, %v1868
        %v1876 = vadd.f32 %v1853, %v1868
        %v1877 = vadd.f32 %v1854, %v1868
        %v1878 = vadd.f32 %v1855, %v1868
        %v1879 = vadd.f32 %v1856, %v1868
        %v1880 = vadd.f32 %v1857, %v1868
        %v1881 = vadd.f32 %v1858, %v1868
        %v1882 = vadd.f32 %v1859, %v1868
        %v1883 = vadd.f32 %v1860, %v1868
        %v1884 = vadd.f32 %v1861, %v1868
        %v1885 = vadd.f32 %v1862, %v1868
        %v1886 = vadd.f32 %v275, %v1870
        %v1887 = vadd.f32 %v276, %v1871
        %v1888 = vadd.f32 %v277, %v1872
        %v1889 = vadd.f32 %v278, %v1873
        %v1890 = vadd.f32 %v279, %v1874
        %v1891 = vadd.f32 %v280, %v1875
        %v1892 = vadd.f32 %v281, %v1876
        %v1893 = vadd.f32 %v282, %v1877
        %v1894 = vadd.f32 %v283, %v1878
        %v1895 = vadd.f32 %v284, %v1879
        %v1896 = vadd.f32 %v285, %v1880
        %v1897 = vadd.f32 %v286, %v1881
        %v1898 = vadd.f32 %v287, %v1882
        %v1899 = vadd.f32 %v288, %v1883
        %v1900 = vadd.f32 %v289, %v1884
        %v1901 = vadd.f32 %v290, %v1885
        %1902 = vst [vmem:[%s271] sm:$0xff] %v1886
        %1903 = vst [vmem:[%s271 + $0x8] sm:$0xff] %v1887
        %1904 = vst [vmem:[%s271 + $0x10] sm:$0xff] %v1888
        %1905 = vst [vmem:[%s271 + $0x18] sm:$0xff] %v1889
        %1906 = vst [vmem:[%s271 + $0x20] sm:$0xff] %v1890
        %1907 = vst [vmem:[%s271 + $0x28] sm:$0xff] %v1891
        %1908 = vst [vmem:[%s271 + $0x30] sm:$0xff] %v1892
        %1909 = vst [vmem:[%s271 + $0x38] sm:$0xff] %v1893
        %1910 = vst [vmem:[%s271 + $0x40] sm:$0xff] %v1894
        %1911 = vst [vmem:[%s271 + $0x48] sm:$0xff] %v1895
        %1912 = vst [vmem:[%s271 + $0x50] sm:$0xff] %v1896
        %1913 = vst [vmem:[%s271 + $0x58] sm:$0xff] %v1897
        %1914 = vst [vmem:[%s271 + $0x60] sm:$0xff] %v1898
        %1915 = vst [vmem:[%s271 + $0x68] sm:$0xff] %v1899
        %1916 = vst [vmem:[%s271 + $0x70] sm:$0xff] %v1900
        %1917 = vst [vmem:[%s271 + $0x78] sm:$0xff] %v1901
        %s1918 = sand.u32 %s141, 1
        %s1919 = scalar_lea.sflag [#allocation4], %s1918
        %s1920 = sand.u32 %s141, 1
        %s1921 = smul.addr %s1920, 128
        %s1922 = scalar_lea.vmem [#allocation8], %s1921
        // Predicated region
        $region53: #{tpu_custom_call.1} parent=39 // pred_check
          %p1923 = pneg %p151
        $region54: #{tpu_custom_call.1} parent=39 // pred_check_branch
          %1925 = sbr.rel (%p1923) target = $region56
        $region55: #{tpu_custom_call.1} parent=39 // pred_region
          %s1926 = smul.u32 16, %s23
          %s1928 = ssub.s32 2048, 2048
          %1929 = vsyncadd %s1919, %s1928
          %s1930 = smul.addr %s1926, 128
          %s1931 = scalar_lea.hbm %s5, %s1930
          %s1932 = sshll.u32 %s1922, 4
          %s1933 = int_to_ptr.vmem [resolvable:$true] %s1932
          %1938 = dma.vmem_to_hbm [thread:$0]  %s1933, 2048, %s1931, %s1919, 128, 128, 8
        $region56: #{tpu_custom_call.1} parent=39 // pred_fallthru
          _
      $region40: #{tpu_custom_call.1} parent=5 // pred_fallthru
        _
      %p1939 = scmp.le.s32.totalorder 2, %s18
      // Predicated region
      $region57: #{tpu_custom_call.1} parent=5 // pred_check
        %p1940 = pneg %p1939
      $region58: #{tpu_custom_call.1} parent=5 // pred_check_branch
        %1942 = sbr.rel (%p1940) target = $region60
      $region59: #{tpu_custom_call.1} parent=5 // pred_region
        %s1943 = ssub.s32 %s18, 2
        // Predicated region
        $region61: #{tpu_custom_call.1} parent=59 // pred_check
          %p1944 = pneg %p157
        $region62: #{tpu_custom_call.1} parent=59 // pred_check_branch
          %1946 = sbr.rel (%p1944) target = $region64
        $region63: #{tpu_custom_call.1} parent=59 // pred_region
          %s1947 = sand.u32 %s142, 1
          %s1948 = scalar_lea.sflag [#allocation4], %s1947
          %s1949 = sand.u32 %s142, 1
          %s1950 = smul.addr %s1949, 128
          %s1951 = scalar_lea.vmem [#allocation8], %s1950
          %1952 = dma.done %s1948, 2048
        $region64: #{tpu_custom_call.1} parent=59 // pred_fallthru
          _
      $region60: #{tpu_custom_call.1} parent=5 // pred_fallthru
        _
    $region6: #{tpu_custom_call.1} parent=1 // loop_footer
      %s22 = sadd.s32 1, %s18
    $region7: #{tpu_custom_call.1} parent=1 // loop_footer_branch
      %17 = sbr.rel target = $region3
    $region8: #{tpu_custom_call.1} parent=1 // loop_exit
      _
    %1953 = vsyncpa [#allocation3], 1
    %s1954 = scalar_lea.sflag [#allocation3], 1
    %1955 = vsyncpa %s1954, 1
    %1956 = vsyncpa [#allocation6], 1
    %1957 = vsyncpa [#allocation4], 1
    %s1958 = scalar_lea.sflag [#allocation4], 1
    %1959 = vsyncpa %s1958, 1

</llo_original>
